<compile_context>
chip_gen: v6e
topology: v6e:2x2x1
jax: 0.10.0
libtpu: 0.0.40
codegen_flags: <defaults>
</compile_context>

<pallas_src>
import functools
import math

import jax
import jax.numpy as jnp
from jax.experimental import pallas as pl
from jax.experimental.pallas import tpu as pltpu


def topk_bce_logits_kernel(x_ref, y_ref, o_ref, *, k_count):
    """One (block_rows, N) row block: per-row sum of the top-k BCE losses."""
    x = x_ref[...].astype(jnp.float32)
    y = y_ref[...].astype(jnp.float32)

    # BCE-with-logits, numerically stable form (same as torch). log(1+e) is
    # used instead of log1p(e); identical to fp noise for values that can win
    # a top-k, and guaranteed to lower onto the EUP.
    loss = jnp.maximum(x, 0.0) - x * y + jnp.log(1.0 + jnp.exp(-jnp.abs(x)))
    loss = jnp.maximum(loss, 0.0)          # BCE loss >= 0 for targets in [0,1]

    rows = loss.shape[0]
    bits = pltpu.bitcast(loss, jnp.int32)  # monotone ordering for nonneg f32
    k_f = jnp.float32(k_count)

    # Bitwise binary search (31 fixed passes, unrolled at trace time) for the
    # largest int32 T with count(bits >= T) >= k. That T is exactly the bit
    # pattern of the k-th largest loss in each row.
    t_bits = jnp.zeros((rows, 1), jnp.int32)
    for bit in range(30, -1, -1):
        cand = t_bits | jnp.int32(1 << bit)
        cnt = jnp.sum((bits >= cand).astype(jnp.float32), axis=-1, keepdims=True)
        t_bits = jnp.where(cnt >= k_f, cand, t_bits)

    thresh = pltpu.bitcast(t_bits, jnp.float32)                    # (rows, 1)

    # Exact top-k sum: all elements strictly above the threshold, plus the
    # remaining (k - count_gt) copies of the threshold value (tie handling).
    gt = bits > t_bits
    sum_gt = jnp.sum(jnp.where(gt, loss, 0.0), axis=-1, keepdims=True)
    cnt_gt = jnp.sum(gt.astype(jnp.float32), axis=-1, keepdims=True)
    row_topk_sum = sum_gt + (k_f - cnt_gt) * thresh                # (rows, 1)

    # Lane-dense store: broadcast the per-row sum across the 128-lane block.
    o_ref[...] = jnp.broadcast_to(row_topk_sum, o_ref.shape)


def _choose_block_rows(B, N, itemsize, budget_bytes=20 * 1024 * 1024):
    """Pick a row-block size that fits comfortably in scoped VMEM on v5e/v6e/v7x."""
    if B % 8 != 0:
        return B                       # small / odd batch: one full-array block
    # Per row: 2 inputs x 2 double-buffers x itemsize + ~5 f32-sized temps
    # (upcasts, loss, bits, compare mask) + the lane-dense output block.
    per_row = N * (4 * itemsize + 20) + 2 * 128 * 4
    cap = max(8, (budget_bytes // per_row) // 8 * 8)
    block_rows = min(B, cap)
    while B % block_rows != 0:         # keep the grid exact (no padded rows)
        block_rows -= 8
    return block_rows


def topk_bce_logits(x, y, top_k=0.5, reduce=True):
    """Pallas implementation of TopkBCELogits.forward(input, target)."""
    assert x.shape == y.shape
    B = x.shape[0]
    num = int(math.prod(x.shape[1:]))
    k_count = int(top_k * num)
    assert 1 <= k_count <= num, "top_k * num must be in [1, num]"

    # Glue: flatten non-batch dims (matches .view(B, -1) on contiguous input).
    x2 = x.reshape(B, num)
    y2 = y.reshape(B, num)

    block_rows = _choose_block_rows(B, num, x2.dtype.itemsize)
    grid = (B // block_rows,)
    kernel = functools.partial(topk_bce_logits_kernel, k_count=k_count)

    out = pl.pallas_call(
        kernel,
        out_shape=jax.ShapeDtypeStruct((B, 128), jnp.float32),
        grid=grid,
        in_specs=[
            pl.BlockSpec((block_rows, num), lambda i: (i, 0)),
            pl.BlockSpec((block_rows, num), lambda i: (i, 0)),
        ],
        out_specs=pl.BlockSpec((block_rows, 128), lambda i: (i, 0)),
        compiler_params=pltpu.CompilerParams(
            dimension_semantics=("parallel",),          # megacore on v7x
            vmem_limit_bytes=32 * 1024 * 1024,
        ),
    )(x2, y2)

    row_topk_sums = out[:, 0]                           # (B,)
    if reduce:
        return jnp.sum(row_topk_sums) / jnp.float32(B * k_count)
    return row_topk_sums / jnp.float32(k_count)


def _reference(x, y, top_k=0.5, reduce=True):
    """Pure-JAX reference (jax.lax.top_k) for verification."""
    B = x.shape[0]
    num = int(math.prod(x.shape[1:]))
    k_count = int(top_k * num)
    xf = x.astype(jnp.float32).reshape(B, num)
    yf = y.astype(jnp.float32).reshape(B, num)
    loss = jnp.maximum(xf, 0.0) - xf * yf + jnp.log1p(jnp.exp(-jnp.abs(xf)))
    u, _ = jax.lax.top_k(loss, k_count)
    return jnp.mean(u) if reduce else jnp.mean(u, axis=1)


if __name__ == "__main__":
    key = jax.random.PRNGKey(0)
    kx, ky = jax.random.split(key)
    # NCHW-shaped logits / targets: batch=2, channels=4, spatial=16x16.
    x = jax.random.normal(kx, (2, 4, 16, 16), dtype=jnp.float32)
    y = jax.random.uniform(ky, (2, 4, 16, 16), dtype=jnp.float32)

    out = topk_bce_logits(x, y, top_k=0.5, reduce=True)
    out = jax.block_until_ready(out)
    ref = _reference(x, y, top_k=0.5, reduce=True)
    assert jnp.allclose(out, ref, atol=1e-5, rtol=1e-5), (out, ref)

    # Also validate the reduce=False (per-row mean) path.
    out_rows = jax.block_until_ready(topk_bce_logits(x, y, top_k=0.5, reduce=False))
    ref_rows = _reference(x, y, top_k=0.5, reduce=False)
    assert jnp.allclose(out_rows, ref_rows, atol=1e-5, rtol=1e-5), (out_rows, ref_rows)

    print("KERNEL_OK")
</pallas_src>

<mosaic_0001>
module attributes {stable_mosaic.version = 11 : i64} {
  func.func @topk_bce_logits_kernel(%arg0: i32, %arg1: memref<2x1024xf32, #tpu.memory_space<vmem>>, %arg2: memref<2x1024xf32, #tpu.memory_space<vmem>>, %arg3: memref<2x128xf32, #tpu.memory_space<vmem>>) attributes {dimension_semantics = [#tpu.dimension_semantics<parallel>], iteration_bounds = array<i64: 1>, scalar_prefetch = 0 : i64, scratch_operands = 0 : i64, tpu.core_type = #tpu.core_type<tc>, window_params = [{transform_indices = @transform_0, window_bounds = array<i64: 2, 1024>}, {transform_indices = @transform_1, window_bounds = array<i64: 2, 1024>}, {transform_indices = @transform_2, window_bounds = array<i64: 2, 128>}]} {
    %c0 = arith.constant 0 : index
    %c0_0 = arith.constant 0 : index
    %0 = vector.load %arg1[%c0, %c0_0] : memref<2x1024xf32, #tpu.memory_space<vmem>>, vector<2x1024xf32>
    %c0_1 = arith.constant 0 : index
    %c0_2 = arith.constant 0 : index
    %1 = vector.load %arg2[%c0_1, %c0_2] : memref<2x1024xf32, #tpu.memory_space<vmem>>, vector<2x1024xf32>
    %cst = arith.constant 0.000000e+00 : f32
    %2 = vector.broadcast %cst : f32 to vector<2x1024xf32>
    %3 = arith.maximumf %0, %2 : vector<2x1024xf32>
    %4 = arith.mulf %0, %1 : vector<2x1024xf32>
    %5 = arith.subf %3, %4 : vector<2x1024xf32>
    %6 = math.absf %0 : vector<2x1024xf32>
    %cst_3 = arith.constant 0.000000e+00 : f32
    %7 = vector.broadcast %cst_3 : f32 to vector<2x1024xf32>
    %8 = arith.subf %7, %6 : vector<2x1024xf32>
    %9 = math.exp %8 : vector<2x1024xf32>
    %cst_4 = arith.constant 1.000000e+00 : f32
    %10 = vector.broadcast %cst_4 : f32 to vector<2x1024xf32>
    %11 = arith.addf %10, %9 : vector<2x1024xf32>
    %12 = math.log %11 : vector<2x1024xf32>
    %13 = arith.addf %5, %12 : vector<2x1024xf32>
    %cst_5 = arith.constant 0.000000e+00 : f32
    %14 = vector.broadcast %cst_5 : f32 to vector<2x1024xf32>
    %15 = arith.maximumf %13, %14 : vector<2x1024xf32>
    %16 = tpu.bitcast %15 : vector<2x1024xf32> -> vector<2x1024xi32>
    %c0_i32 = arith.constant 0 : i32
    %17 = vector.broadcast %c0_i32 : i32 to vector<2x1xi32>
    %c1073741824_i32 = arith.constant 1073741824 : i32
    %18 = vector.broadcast %c1073741824_i32 : i32 to vector<2x1xi32>
    %19 = arith.ori %17, %18 : vector<2x1xi32>
    %20 = vector.broadcast %19 : vector<2x1xi32> to vector<2x1024xi32>
    %21 = arith.cmpi sge, %16, %20 : vector<2x1024xi32>
    %22 = arith.extui %21 : vector<2x1024xi1> to vector<2x1024xi32>
    %23 = arith.sitofp %22 : vector<2x1024xi32> to vector<2x1024xf32>
    %cst_6 = arith.constant dense<0.000000e+00> : vector<2xf32>
    %24 = vector.multi_reduction <add>, %23, %cst_6 [1] : vector<2x1024xf32> to vector<2xf32>
    %25 = vector.shape_cast %24 : vector<2xf32> to vector<2x1xf32>
    %cst_7 = arith.constant 5.120000e+02 : f32
    %26 = vector.broadcast %cst_7 : f32 to vector<2x1xf32>
    %27 = arith.cmpf oge, %25, %26 : vector<2x1xf32>
    %28 = arith.select %27, %19, %17 : vector<2x1xi1>, vector<2x1xi32>
    %c536870912_i32 = arith.constant 536870912 : i32
    %29 = vector.broadcast %c536870912_i32 : i32 to vector<2x1xi32>
    %30 = arith.ori %28, %29 : vector<2x1xi32>
    %31 = vector.broadcast %30 : vector<2x1xi32> to vector<2x1024xi32>
    %32 = arith.cmpi sge, %16, %31 : vector<2x1024xi32>
    %33 = arith.extui %32 : vector<2x1024xi1> to vector<2x1024xi32>
    %34 = arith.sitofp %33 : vector<2x1024xi32> to vector<2x1024xf32>
    %cst_8 = arith.constant dense<0.000000e+00> : vector<2xf32>
    %35 = vector.multi_reduction <add>, %34, %cst_8 [1] : vector<2x1024xf32> to vector<2xf32>
    %36 = vector.shape_cast %35 : vector<2xf32> to vector<2x1xf32>
    %cst_9 = arith.constant 5.120000e+02 : f32
    %37 = vector.broadcast %cst_9 : f32 to vector<2x1xf32>
    %38 = arith.cmpf oge, %36, %37 : vector<2x1xf32>
    %39 = arith.select %38, %30, %28 : vector<2x1xi1>, vector<2x1xi32>
    %c268435456_i32 = arith.constant 268435456 : i32
    %40 = vector.broadcast %c268435456_i32 : i32 to vector<2x1xi32>
    %41 = arith.ori %39, %40 : vector<2x1xi32>
    %42 = vector.broadcast %41 : vector<2x1xi32> to vector<2x1024xi32>
    %43 = arith.cmpi sge, %16, %42 : vector<2x1024xi32>
    %44 = arith.extui %43 : vector<2x1024xi1> to vector<2x1024xi32>
    %45 = arith.sitofp %44 : vector<2x1024xi32> to vector<2x1024xf32>
    %cst_10 = arith.constant dense<0.000000e+00> : vector<2xf32>
    %46 = vector.multi_reduction <add>, %45, %cst_10 [1] : vector<2x1024xf32> to vector<2xf32>
    %47 = vector.shape_cast %46 : vector<2xf32> to vector<2x1xf32>
    %cst_11 = arith.constant 5.120000e+02 : f32
    %48 = vector.broadcast %cst_11 : f32 to vector<2x1xf32>
    %49 = arith.cmpf oge, %47, %48 : vector<2x1xf32>
    %50 = arith.select %49, %41, %39 : vector<2x1xi1>, vector<2x1xi32>
    %c134217728_i32 = arith.constant 134217728 : i32
    %51 = vector.broadcast %c134217728_i32 : i32 to vector<2x1xi32>
    %52 = arith.ori %50, %51 : vector<2x1xi32>
    %53 = vector.broadcast %52 : vector<2x1xi32> to vector<2x1024xi32>
    %54 = arith.cmpi sge, %16, %53 : vector<2x1024xi32>
    %55 = arith.extui %54 : vector<2x1024xi1> to vector<2x1024xi32>
    %56 = arith.sitofp %55 : vector<2x1024xi32> to vector<2x1024xf32>
    %cst_12 = arith.constant dense<0.000000e+00> : vector<2xf32>
    %57 = vector.multi_reduction <add>, %56, %cst_12 [1] : vector<2x1024xf32> to vector<2xf32>
    %58 = vector.shape_cast %57 : vector<2xf32> to vector<2x1xf32>
    %cst_13 = arith.constant 5.120000e+02 : f32
    %59 = vector.broadcast %cst_13 : f32 to vector<2x1xf32>
    %60 = arith.cmpf oge, %58, %59 : vector<2x1xf32>
    %61 = arith.select %60, %52, %50 : vector<2x1xi1>, vector<2x1xi32>
    %c67108864_i32 = arith.constant 67108864 : i32
    %62 = vector.broadcast %c67108864_i32 : i32 to vector<2x1xi32>
    %63 = arith.ori %61, %62 : vector<2x1xi32>
    %64 = vector.broadcast %63 : vector<2x1xi32> to vector<2x1024xi32>
    %65 = arith.cmpi sge, %16, %64 : vector<2x1024xi32>
    %66 = arith.extui %65 : vector<2x1024xi1> to vector<2x1024xi32>
    %67 = arith.sitofp %66 : vector<2x1024xi32> to vector<2x1024xf32>
    %cst_14 = arith.constant dense<0.000000e+00> : vector<2xf32>
    %68 = vector.multi_reduction <add>, %67, %cst_14 [1] : vector<2x1024xf32> to vector<2xf32>
    %69 = vector.shape_cast %68 : vector<2xf32> to vector<2x1xf32>
    %cst_15 = arith.constant 5.120000e+02 : f32
    %70 = vector.broadcast %cst_15 : f32 to vector<2x1xf32>
    %71 = arith.cmpf oge, %69, %70 : vector<2x1xf32>
    %72 = arith.select %71, %63, %61 : vector<2x1xi1>, vector<2x1xi32>
    %c33554432_i32 = arith.constant 33554432 : i32
    %73 = vector.broadcast %c33554432_i32 : i32 to vector<2x1xi32>
    %74 = arith.ori %72, %73 : vector<2x1xi32>
    %75 = vector.broadcast %74 : vector<2x1xi32> to vector<2x1024xi32>
    %76 = arith.cmpi sge, %16, %75 : vector<2x1024xi32>
    %77 = arith.extui %76 : vector<2x1024xi1> to vector<2x1024xi32>
    %78 = arith.sitofp %77 : vector<2x1024xi32> to vector<2x1024xf32>
    %cst_16 = arith.constant dense<0.000000e+00> : vector<2xf32>
    %79 = vector.multi_reduction <add>, %78, %cst_16 [1] : vector<2x1024xf32> to vector<2xf32>
    %80 = vector.shape_cast %79 : vector<2xf32> to vector<2x1xf32>
    %cst_17 = arith.constant 5.120000e+02 : f32
    %81 = vector.broadcast %cst_17 : f32 to vector<2x1xf32>
    %82 = arith.cmpf oge, %80, %81 : vector<2x1xf32>
    %83 = arith.select %82, %74, %72 : vector<2x1xi1>, vector<2x1xi32>
    %c16777216_i32 = arith.constant 16777216 : i32
    %84 = vector.broadcast %c16777216_i32 : i32 to vector<2x1xi32>
    %85 = arith.ori %83, %84 : vector<2x1xi32>
    %86 = vector.broadcast %85 : vector<2x1xi32> to vector<2x1024xi32>
    %87 = arith.cmpi sge, %16, %86 : vector<2x1024xi32>
    %88 = arith.extui %87 : vector<2x1024xi1> to vector<2x1024xi32>
    %89 = arith.sitofp %88 : vector<2x1024xi32> to vector<2x1024xf32>
    %cst_18 = arith.constant dense<0.000000e+00> : vector<2xf32>
    %90 = vector.multi_reduction <add>, %89, %cst_18 [1] : vector<2x1024xf32> to vector<2xf32>
    %91 = vector.shape_cast %90 : vector<2xf32> to vector<2x1xf32>
    %cst_19 = arith.constant 5.120000e+02 : f32
    %92 = vector.broadcast %cst_19 : f32 to vector<2x1xf32>
    %93 = arith.cmpf oge, %91, %92 : vector<2x1xf32>
    %94 = arith.select %93, %85, %83 : vector<2x1xi1>, vector<2x1xi32>
    %c8388608_i32 = arith.constant 8388608 : i32
    %95 = vector.broadcast %c8388608_i32 : i32 to vector<2x1xi32>
    %96 = arith.ori %94, %95 : vector<2x1xi32>
    %97 = vector.broadcast %96 : vector<2x1xi32> to vector<2x1024xi32>
    %98 = arith.cmpi sge, %16, %97 : vector<2x1024xi32>
    %99 = arith.extui %98 : vector<2x1024xi1> to vector<2x1024xi32>
    %100 = arith.sitofp %99 : vector<2x1024xi32> to vector<2x1024xf32>
    %cst_20 = arith.constant dense<0.000000e+00> : vector<2xf32>
    %101 = vector.multi_reduction <add>, %100, %cst_20 [1] : vector<2x1024xf32> to vector<2xf32>
    %102 = vector.shape_cast %101 : vector<2xf32> to vector<2x1xf32>
    %cst_21 = arith.constant 5.120000e+02 : f32
    %103 = vector.broadcast %cst_21 : f32 to vector<2x1xf32>
    %104 = arith.cmpf oge, %102, %103 : vector<2x1xf32>
    %105 = arith.select %104, %96, %94 : vector<2x1xi1>, vector<2x1xi32>
    %c4194304_i32 = arith.constant 4194304 : i32
    %106 = vector.broadcast %c4194304_i32 : i32 to vector<2x1xi32>
    %107 = arith.ori %105, %106 : vector<2x1xi32>
    %108 = vector.broadcast %107 : vector<2x1xi32> to vector<2x1024xi32>
    %109 = arith.cmpi sge, %16, %108 : vector<2x1024xi32>
    %110 = arith.extui %109 : vector<2x1024xi1> to vector<2x1024xi32>
    %111 = arith.sitofp %110 : vector<2x1024xi32> to vector<2x1024xf32>
    %cst_22 = arith.constant dense<0.000000e+00> : vector<2xf32>
    %112 = vector.multi_reduction <add>, %111, %cst_22 [1] : vector<2x1024xf32> to vector<2xf32>
    %113 = vector.shape_cast %112 : vector<2xf32> to vector<2x1xf32>
    %cst_23 = arith.constant 5.120000e+02 : f32
    %114 = vector.broadcast %cst_23 : f32 to vector<2x1xf32>
    %115 = arith.cmpf oge, %113, %114 : vector<2x1xf32>
    %116 = arith.select %115, %107, %105 : vector<2x1xi1>, vector<2x1xi32>
    %c2097152_i32 = arith.constant 2097152 : i32
    %117 = vector.broadcast %c2097152_i32 : i32 to vector<2x1xi32>
    %118 = arith.ori %116, %117 : vector<2x1xi32>
    %119 = vector.broadcast %118 : vector<2x1xi32> to vector<2x1024xi32>
    %120 = arith.cmpi sge, %16, %119 : vector<2x1024xi32>
    %121 = arith.extui %120 : vector<2x1024xi1> to vector<2x1024xi32>
    %122 = arith.sitofp %121 : vector<2x1024xi32> to vector<2x1024xf32>
    %cst_24 = arith.constant dense<0.000000e+00> : vector<2xf32>
    %123 = vector.multi_reduction <add>, %122, %cst_24 [1] : vector<2x1024xf32> to vector<2xf32>
    %124 = vector.shape_cast %123 : vector<2xf32> to vector<2x1xf32>
    %cst_25 = arith.constant 5.120000e+02 : f32
    %125 = vector.broadcast %cst_25 : f32 to vector<2x1xf32>
    %126 = arith.cmpf oge, %124, %125 : vector<2x1xf32>
    %127 = arith.select %126, %118, %116 : vector<2x1xi1>, vector<2x1xi32>
    %c1048576_i32 = arith.constant 1048576 : i32
    %128 = vector.broadcast %c1048576_i32 : i32 to vector<2x1xi32>
    %129 = arith.ori %127, %128 : vector<2x1xi32>
    %130 = vector.broadcast %129 : vector<2x1xi32> to vector<2x1024xi32>
    %131 = arith.cmpi sge, %16, %130 : vector<2x1024xi32>
    %132 = arith.extui %131 : vector<2x1024xi1> to vector<2x1024xi32>
    %133 = arith.sitofp %132 : vector<2x1024xi32> to vector<2x1024xf32>
    %cst_26 = arith.constant dense<0.000000e+00> : vector<2xf32>
    %134 = vector.multi_reduction <add>, %133, %cst_26 [1] : vector<2x1024xf32> to vector<2xf32>
    %135 = vector.shape_cast %134 : vector<2xf32> to vector<2x1xf32>
    %cst_27 = arith.constant 5.120000e+02 : f32
    %136 = vector.broadcast %cst_27 : f32 to vector<2x1xf32>
    %137 = arith.cmpf oge, %135, %136 : vector<2x1xf32>
    %138 = arith.select %137, %129, %127 : vector<2x1xi1>, vector<2x1xi32>
    %c524288_i32 = arith.constant 524288 : i32
    %139 = vector.broadcast %c524288_i32 : i32 to vector<2x1xi32>
    %140 = arith.ori %138, %139 : vector<2x1xi32>
    %141 = vector.broadcast %140 : vector<2x1xi32> to vector<2x1024xi32>
    %142 = arith.cmpi sge, %16, %141 : vector<2x1024xi32>
    %143 = arith.extui %142 : vector<2x1024xi1> to vector<2x1024xi32>
    %144 = arith.sitofp %143 : vector<2x1024xi32> to vector<2x1024xf32>
    %cst_28 = arith.constant dense<0.000000e+00> : vector<2xf32>
    %145 = vector.multi_reduction <add>, %144, %cst_28 [1] : vector<2x1024xf32> to vector<2xf32>
    %146 = vector.shape_cast %145 : vector<2xf32> to vector<2x1xf32>
    %cst_29 = arith.constant 5.120000e+02 : f32
    %147 = vector.broadcast %cst_29 : f32 to vector<2x1xf32>
    %148 = arith.cmpf oge, %146, %147 : vector<2x1xf32>
    %149 = arith.select %148, %140, %138 : vector<2x1xi1>, vector<2x1xi32>
    %c262144_i32 = arith.constant 262144 : i32
    %150 = vector.broadcast %c262144_i32 : i32 to vector<2x1xi32>
    %151 = arith.ori %149, %150 : vector<2x1xi32>
    %152 = vector.broadcast %151 : vector<2x1xi32> to vector<2x1024xi32>
    %153 = arith.cmpi sge, %16, %152 : vector<2x1024xi32>
    %154 = arith.extui %153 : vector<2x1024xi1> to vector<2x1024xi32>
    %155 = arith.sitofp %154 : vector<2x1024xi32> to vector<2x1024xf32>
    %cst_30 = arith.constant dense<0.000000e+00> : vector<2xf32>
    %156 = vector.multi_reduction <add>, %155, %cst_30 [1] : vector<2x1024xf32> to vector<2xf32>
    %157 = vector.shape_cast %156 : vector<2xf32> to vector<2x1xf32>
    %cst_31 = arith.constant 5.120000e+02 : f32
    %158 = vector.broadcast %cst_31 : f32 to vector<2x1xf32>
    %159 = arith.cmpf oge, %157, %158 : vector<2x1xf32>
    %160 = arith.select %159, %151, %149 : vector<2x1xi1>, vector<2x1xi32>
    %c131072_i32 = arith.constant 131072 : i32
    %161 = vector.broadcast %c131072_i32 : i32 to vector<2x1xi32>
    %162 = arith.ori %160, %161 : vector<2x1xi32>
    %163 = vector.broadcast %162 : vector<2x1xi32> to vector<2x1024xi32>
    %164 = arith.cmpi sge, %16, %163 : vector<2x1024xi32>
    %165 = arith.extui %164 : vector<2x1024xi1> to vector<2x1024xi32>
    %166 = arith.sitofp %165 : vector<2x1024xi32> to vector<2x1024xf32>
    %cst_32 = arith.constant dense<0.000000e+00> : vector<2xf32>
    %167 = vector.multi_reduction <add>, %166, %cst_32 [1] : vector<2x1024xf32> to vector<2xf32>
    %168 = vector.shape_cast %167 : vector<2xf32> to vector<2x1xf32>
    %cst_33 = arith.constant 5.120000e+02 : f32
    %169 = vector.broadcast %cst_33 : f32 to vector<2x1xf32>
    %170 = arith.cmpf oge, %168, %169 : vector<2x1xf32>
    %171 = arith.select %170, %162, %160 : vector<2x1xi1>, vector<2x1xi32>
    %c65536_i32 = arith.constant 65536 : i32
    %172 = vector.broadcast %c65536_i32 : i32 to vector<2x1xi32>
    %173 = arith.ori %171, %172 : vector<2x1xi32>
    %174 = vector.broadcast %173 : vector<2x1xi32> to vector<2x1024xi32>
    %175 = arith.cmpi sge, %16, %174 : vector<2x1024xi32>
    %176 = arith.extui %175 : vector<2x1024xi1> to vector<2x1024xi32>
    %177 = arith.sitofp %176 : vector<2x1024xi32> to vector<2x1024xf32>
    %cst_34 = arith.constant dense<0.000000e+00> : vector<2xf32>
    %178 = vector.multi_reduction <add>, %177, %cst_34 [1] : vector<2x1024xf32> to vector<2xf32>
    %179 = vector.shape_cast %178 : vector<2xf32> to vector<2x1xf32>
    %cst_35 = arith.constant 5.120000e+02 : f32
    %180 = vector.broadcast %cst_35 : f32 to vector<2x1xf32>
    %181 = arith.cmpf oge, %179, %180 : vector<2x1xf32>
    %182 = arith.select %181, %173, %171 : vector<2x1xi1>, vector<2x1xi32>
    %c32768_i32 = arith.constant 32768 : i32
    %183 = vector.broadcast %c32768_i32 : i32 to vector<2x1xi32>
    %184 = arith.ori %182, %183 : vector<2x1xi32>
    %185 = vector.broadcast %184 : vector<2x1xi32> to vector<2x1024xi32>
    %186 = arith.cmpi sge, %16, %185 : vector<2x1024xi32>
    %187 = arith.extui %186 : vector<2x1024xi1> to vector<2x1024xi32>
    %188 = arith.sitofp %187 : vector<2x1024xi32> to vector<2x1024xf32>
    %cst_36 = arith.constant dense<0.000000e+00> : vector<2xf32>
    %189 = vector.multi_reduction <add>, %188, %cst_36 [1] : vector<2x1024xf32> to vector<2xf32>
    %190 = vector.shape_cast %189 : vector<2xf32> to vector<2x1xf32>
    %cst_37 = arith.constant 5.120000e+02 : f32
    %191 = vector.broadcast %cst_37 : f32 to vector<2x1xf32>
    %192 = arith.cmpf oge, %190, %191 : vector<2x1xf32>
    %193 = arith.select %192, %184, %182 : vector<2x1xi1>, vector<2x1xi32>
    %c16384_i32 = arith.constant 16384 : i32
    %194 = vector.broadcast %c16384_i32 : i32 to vector<2x1xi32>
    %195 = arith.ori %193, %194 : vector<2x1xi32>
    %196 = vector.broadcast %195 : vector<2x1xi32> to vector<2x1024xi32>
    %197 = arith.cmpi sge, %16, %196 : vector<2x1024xi32>
    %198 = arith.extui %197 : vector<2x1024xi1> to vector<2x1024xi32>
    %199 = arith.sitofp %198 : vector<2x1024xi32> to vector<2x1024xf32>
    %cst_38 = arith.constant dense<0.000000e+00> : vector<2xf32>
    %200 = vector.multi_reduction <add>, %199, %cst_38 [1] : vector<2x1024xf32> to vector<2xf32>
    %201 = vector.shape_cast %200 : vector<2xf32> to vector<2x1xf32>
    %cst_39 = arith.constant 5.120000e+02 : f32
    %202 = vector.broadcast %cst_39 : f32 to vector<2x1xf32>
    %203 = arith.cmpf oge, %201, %202 : vector<2x1xf32>
    %204 = arith.select %203, %195, %193 : vector<2x1xi1>, vector<2x1xi32>
    %c8192_i32 = arith.constant 8192 : i32
    %205 = vector.broadcast %c8192_i32 : i32 to vector<2x1xi32>
    %206 = arith.ori %204, %205 : vector<2x1xi32>
    %207 = vector.broadcast %206 : vector<2x1xi32> to vector<2x1024xi32>
    %208 = arith.cmpi sge, %16, %207 : vector<2x1024xi32>
    %209 = arith.extui %208 : vector<2x1024xi1> to vector<2x1024xi32>
    %210 = arith.sitofp %209 : vector<2x1024xi32> to vector<2x1024xf32>
    %cst_40 = arith.constant dense<0.000000e+00> : vector<2xf32>
    %211 = vector.multi_reduction <add>, %210, %cst_40 [1] : vector<2x1024xf32> to vector<2xf32>
    %212 = vector.shape_cast %211 : vector<2xf32> to vector<2x1xf32>
    %cst_41 = arith.constant 5.120000e+02 : f32
    %213 = vector.broadcast %cst_41 : f32 to vector<2x1xf32>
    %214 = arith.cmpf oge, %212, %213 : vector<2x1xf32>
    %215 = arith.select %214, %206, %204 : vector<2x1xi1>, vector<2x1xi32>
    %c4096_i32 = arith.constant 4096 : i32
    %216 = vector.broadcast %c4096_i32 : i32 to vector<2x1xi32>
    %217 = arith.ori %215, %216 : vector<2x1xi32>
    %218 = vector.broadcast %217 : vector<2x1xi32> to vector<2x1024xi32>
    %219 = arith.cmpi sge, %16, %218 : vector<2x1024xi32>
    %220 = arith.extui %219 : vector<2x1024xi1> to vector<2x1024xi32>
    %221 = arith.sitofp %220 : vector<2x1024xi32> to vector<2x1024xf32>
    %cst_42 = arith.constant dense<0.000000e+00> : vector<2xf32>
    %222 = vector.multi_reduction <add>, %221, %cst_42 [1] : vector<2x1024xf32> to vector<2xf32>
    %223 = vector.shape_cast %222 : vector<2xf32> to vector<2x1xf32>
    %cst_43 = arith.constant 5.120000e+02 : f32
    %224 = vector.broadcast %cst_43 : f32 to vector<2x1xf32>
    %225 = arith.cmpf oge, %223, %224 : vector<2x1xf32>
    %226 = arith.select %225, %217, %215 : vector<2x1xi1>, vector<2x1xi32>
    %c2048_i32 = arith.constant 2048 : i32
    %227 = vector.broadcast %c2048_i32 : i32 to vector<2x1xi32>
    %228 = arith.ori %226, %227 : vector<2x1xi32>
    %229 = vector.broadcast %228 : vector<2x1xi32> to vector<2x1024xi32>
    %230 = arith.cmpi sge, %16, %229 : vector<2x1024xi32>
    %231 = arith.extui %230 : vector<2x1024xi1> to vector<2x1024xi32>
    %232 = arith.sitofp %231 : vector<2x1024xi32> to vector<2x1024xf32>
    %cst_44 = arith.constant dense<0.000000e+00> : vector<2xf32>
    %233 = vector.multi_reduction <add>, %232, %cst_44 [1] : vector<2x1024xf32> to vector<2xf32>
    %234 = vector.shape_cast %233 : vector<2xf32> to vector<2x1xf32>
    %cst_45 = arith.constant 5.120000e+02 : f32
    %235 = vector.broadcast %cst_45 : f32 to vector<2x1xf32>
    %236 = arith.cmpf oge, %234, %235 : vector<2x1xf32>
    %237 = arith.select %236, %228, %226 : vector<2x1xi1>, vector<2x1xi32>
    %c1024_i32 = arith.constant 1024 : i32
    %238 = vector.broadcast %c1024_i32 : i32 to vector<2x1xi32>
    %239 = arith.ori %237, %238 : vector<2x1xi32>
    %240 = vector.broadcast %239 : vector<2x1xi32> to vector<2x1024xi32>
    %241 = arith.cmpi sge, %16, %240 : vector<2x1024xi32>
    %242 = arith.extui %241 : vector<2x1024xi1> to vector<2x1024xi32>
    %243 = arith.sitofp %242 : vector<2x1024xi32> to vector<2x1024xf32>
    %cst_46 = arith.constant dense<0.000000e+00> : vector<2xf32>
    %244 = vector.multi_reduction <add>, %243, %cst_46 [1] : vector<2x1024xf32> to vector<2xf32>
    %245 = vector.shape_cast %244 : vector<2xf32> to vector<2x1xf32>
    %cst_47 = arith.constant 5.120000e+02 : f32
    %246 = vector.broadcast %cst_47 : f32 to vector<2x1xf32>
    %247 = arith.cmpf oge, %245, %246 : vector<2x1xf32>
    %248 = arith.select %247, %239, %237 : vector<2x1xi1>, vector<2x1xi32>
    %c512_i32 = arith.constant 512 : i32
    %249 = vector.broadcast %c512_i32 : i32 to vector<2x1xi32>
    %250 = arith.ori %248, %249 : vector<2x1xi32>
    %251 = vector.broadcast %250 : vector<2x1xi32> to vector<2x1024xi32>
    %252 = arith.cmpi sge, %16, %251 : vector<2x1024xi32>
    %253 = arith.extui %252 : vector<2x1024xi1> to vector<2x1024xi32>
    %254 = arith.sitofp %253 : vector<2x1024xi32> to vector<2x1024xf32>
    %cst_48 = arith.constant dense<0.000000e+00> : vector<2xf32>
    %255 = vector.multi_reduction <add>, %254, %cst_48 [1] : vector<2x1024xf32> to vector<2xf32>
    %256 = vector.shape_cast %255 : vector<2xf32> to vector<2x1xf32>
    %cst_49 = arith.constant 5.120000e+02 : f32
    %257 = vector.broadcast %cst_49 : f32 to vector<2x1xf32>
    %258 = arith.cmpf oge, %256, %257 : vector<2x1xf32>
    %259 = arith.select %258, %250, %248 : vector<2x1xi1>, vector<2x1xi32>
    %c256_i32 = arith.constant 256 : i32
    %260 = vector.broadcast %c256_i32 : i32 to vector<2x1xi32>
    %261 = arith.ori %259, %260 : vector<2x1xi32>
    %262 = vector.broadcast %261 : vector<2x1xi32> to vector<2x1024xi32>
    %263 = arith.cmpi sge, %16, %262 : vector<2x1024xi32>
    %264 = arith.extui %263 : vector<2x1024xi1> to vector<2x1024xi32>
    %265 = arith.sitofp %264 : vector<2x1024xi32> to vector<2x1024xf32>
    %cst_50 = arith.constant dense<0.000000e+00> : vector<2xf32>
    %266 = vector.multi_reduction <add>, %265, %cst_50 [1] : vector<2x1024xf32> to vector<2xf32>
    %267 = vector.shape_cast %266 : vector<2xf32> to vector<2x1xf32>
    %cst_51 = arith.constant 5.120000e+02 : f32
    %268 = vector.broadcast %cst_51 : f32 to vector<2x1xf32>
    %269 = arith.cmpf oge, %267, %268 : vector<2x1xf32>
    %270 = arith.select %269, %261, %259 : vector<2x1xi1>, vector<2x1xi32>
    %c128_i32 = arith.constant 128 : i32
    %271 = vector.broadcast %c128_i32 : i32 to vector<2x1xi32>
    %272 = arith.ori %270, %271 : vector<2x1xi32>
    %273 = vector.broadcast %272 : vector<2x1xi32> to vector<2x1024xi32>
    %274 = arith.cmpi sge, %16, %273 : vector<2x1024xi32>
    %275 = arith.extui %274 : vector<2x1024xi1> to vector<2x1024xi32>
    %276 = arith.sitofp %275 : vector<2x1024xi32> to vector<2x1024xf32>
    %cst_52 = arith.constant dense<0.000000e+00> : vector<2xf32>
    %277 = vector.multi_reduction <add>, %276, %cst_52 [1] : vector<2x1024xf32> to vector<2xf32>
    %278 = vector.shape_cast %277 : vector<2xf32> to vector<2x1xf32>
    %cst_53 = arith.constant 5.120000e+02 : f32
    %279 = vector.broadcast %cst_53 : f32 to vector<2x1xf32>
    %280 = arith.cmpf oge, %278, %279 : vector<2x1xf32>
    %281 = arith.select %280, %272, %270 : vector<2x1xi1>, vector<2x1xi32>
    %c64_i32 = arith.constant 64 : i32
    %282 = vector.broadcast %c64_i32 : i32 to vector<2x1xi32>
    %283 = arith.ori %281, %282 : vector<2x1xi32>
    %284 = vector.broadcast %283 : vector<2x1xi32> to vector<2x1024xi32>
    %285 = arith.cmpi sge, %16, %284 : vector<2x1024xi32>
    %286 = arith.extui %285 : vector<2x1024xi1> to vector<2x1024xi32>
    %287 = arith.sitofp %286 : vector<2x1024xi32> to vector<2x1024xf32>
    %cst_54 = arith.constant dense<0.000000e+00> : vector<2xf32>
    %288 = vector.multi_reduction <add>, %287, %cst_54 [1] : vector<2x1024xf32> to vector<2xf32>
    %289 = vector.shape_cast %288 : vector<2xf32> to vector<2x1xf32>
    %cst_55 = arith.constant 5.120000e+02 : f32
    %290 = vector.broadcast %cst_55 : f32 to vector<2x1xf32>
    %291 = arith.cmpf oge, %289, %290 : vector<2x1xf32>
    %292 = arith.select %291, %283, %281 : vector<2x1xi1>, vector<2x1xi32>
    %c32_i32 = arith.constant 32 : i32
    %293 = vector.broadcast %c32_i32 : i32 to vector<2x1xi32>
    %294 = arith.ori %292, %293 : vector<2x1xi32>
    %295 = vector.broadcast %294 : vector<2x1xi32> to vector<2x1024xi32>
    %296 = arith.cmpi sge, %16, %295 : vector<2x1024xi32>
    %297 = arith.extui %296 : vector<2x1024xi1> to vector<2x1024xi32>
    %298 = arith.sitofp %297 : vector<2x1024xi32> to vector<2x1024xf32>
    %cst_56 = arith.constant dense<0.000000e+00> : vector<2xf32>
    %299 = vector.multi_reduction <add>, %298, %cst_56 [1] : vector<2x1024xf32> to vector<2xf32>
    %300 = vector.shape_cast %299 : vector<2xf32> to vector<2x1xf32>
    %cst_57 = arith.constant 5.120000e+02 : f32
    %301 = vector.broadcast %cst_57 : f32 to vector<2x1xf32>
    %302 = arith.cmpf oge, %300, %301 : vector<2x1xf32>
    %303 = arith.select %302, %294, %292 : vector<2x1xi1>, vector<2x1xi32>
    %c16_i32 = arith.constant 16 : i32
    %304 = vector.broadcast %c16_i32 : i32 to vector<2x1xi32>
    %305 = arith.ori %303, %304 : vector<2x1xi32>
    %306 = vector.broadcast %305 : vector<2x1xi32> to vector<2x1024xi32>
    %307 = arith.cmpi sge, %16, %306 : vector<2x1024xi32>
    %308 = arith.extui %307 : vector<2x1024xi1> to vector<2x1024xi32>
    %309 = arith.sitofp %308 : vector<2x1024xi32> to vector<2x1024xf32>
    %cst_58 = arith.constant dense<0.000000e+00> : vector<2xf32>
    %310 = vector.multi_reduction <add>, %309, %cst_58 [1] : vector<2x1024xf32> to vector<2xf32>
    %311 = vector.shape_cast %310 : vector<2xf32> to vector<2x1xf32>
    %cst_59 = arith.constant 5.120000e+02 : f32
    %312 = vector.broadcast %cst_59 : f32 to vector<2x1xf32>
    %313 = arith.cmpf oge, %311, %312 : vector<2x1xf32>
    %314 = arith.select %313, %305, %303 : vector<2x1xi1>, vector<2x1xi32>
    %c8_i32 = arith.constant 8 : i32
    %315 = vector.broadcast %c8_i32 : i32 to vector<2x1xi32>
    %316 = arith.ori %314, %315 : vector<2x1xi32>
    %317 = vector.broadcast %316 : vector<2x1xi32> to vector<2x1024xi32>
    %318 = arith.cmpi sge, %16, %317 : vector<2x1024xi32>
    %319 = arith.extui %318 : vector<2x1024xi1> to vector<2x1024xi32>
    %320 = arith.sitofp %319 : vector<2x1024xi32> to vector<2x1024xf32>
    %cst_60 = arith.constant dense<0.000000e+00> : vector<2xf32>
    %321 = vector.multi_reduction <add>, %320, %cst_60 [1] : vector<2x1024xf32> to vector<2xf32>
    %322 = vector.shape_cast %321 : vector<2xf32> to vector<2x1xf32>
    %cst_61 = arith.constant 5.120000e+02 : f32
    %323 = vector.broadcast %cst_61 : f32 to vector<2x1xf32>
    %324 = arith.cmpf oge, %322, %323 : vector<2x1xf32>
    %325 = arith.select %324, %316, %314 : vector<2x1xi1>, vector<2x1xi32>
    %c4_i32 = arith.constant 4 : i32
    %326 = vector.broadcast %c4_i32 : i32 to vector<2x1xi32>
    %327 = arith.ori %325, %326 : vector<2x1xi32>
    %328 = vector.broadcast %327 : vector<2x1xi32> to vector<2x1024xi32>
    %329 = arith.cmpi sge, %16, %328 : vector<2x1024xi32>
    %330 = arith.extui %329 : vector<2x1024xi1> to vector<2x1024xi32>
    %331 = arith.sitofp %330 : vector<2x1024xi32> to vector<2x1024xf32>
    %cst_62 = arith.constant dense<0.000000e+00> : vector<2xf32>
    %332 = vector.multi_reduction <add>, %331, %cst_62 [1] : vector<2x1024xf32> to vector<2xf32>
    %333 = vector.shape_cast %332 : vector<2xf32> to vector<2x1xf32>
    %cst_63 = arith.constant 5.120000e+02 : f32
    %334 = vector.broadcast %cst_63 : f32 to vector<2x1xf32>
    %335 = arith.cmpf oge, %333, %334 : vector<2x1xf32>
    %336 = arith.select %335, %327, %325 : vector<2x1xi1>, vector<2x1xi32>
    %c2_i32 = arith.constant 2 : i32
    %337 = vector.broadcast %c2_i32 : i32 to vector<2x1xi32>
    %338 = arith.ori %336, %337 : vector<2x1xi32>
    %339 = vector.broadcast %338 : vector<2x1xi32> to vector<2x1024xi32>
    %340 = arith.cmpi sge, %16, %339 : vector<2x1024xi32>
    %341 = arith.extui %340 : vector<2x1024xi1> to vector<2x1024xi32>
    %342 = arith.sitofp %341 : vector<2x1024xi32> to vector<2x1024xf32>
    %cst_64 = arith.constant dense<0.000000e+00> : vector<2xf32>
    %343 = vector.multi_reduction <add>, %342, %cst_64 [1] : vector<2x1024xf32> to vector<2xf32>
    %344 = vector.shape_cast %343 : vector<2xf32> to vector<2x1xf32>
    %cst_65 = arith.constant 5.120000e+02 : f32
    %345 = vector.broadcast %cst_65 : f32 to vector<2x1xf32>
    %346 = arith.cmpf oge, %344, %345 : vector<2x1xf32>
    %347 = arith.select %346, %338, %336 : vector<2x1xi1>, vector<2x1xi32>
    %c1_i32 = arith.constant 1 : i32
    %348 = vector.broadcast %c1_i32 : i32 to vector<2x1xi32>
    %349 = arith.ori %347, %348 : vector<2x1xi32>
    %350 = vector.broadcast %349 : vector<2x1xi32> to vector<2x1024xi32>
    %351 = arith.cmpi sge, %16, %350 : vector<2x1024xi32>
    %352 = arith.extui %351 : vector<2x1024xi1> to vector<2x1024xi32>
    %353 = arith.sitofp %352 : vector<2x1024xi32> to vector<2x1024xf32>
    %cst_66 = arith.constant dense<0.000000e+00> : vector<2xf32>
    %354 = vector.multi_reduction <add>, %353, %cst_66 [1] : vector<2x1024xf32> to vector<2xf32>
    %355 = vector.shape_cast %354 : vector<2xf32> to vector<2x1xf32>
    %cst_67 = arith.constant 5.120000e+02 : f32
    %356 = vector.broadcast %cst_67 : f32 to vector<2x1xf32>
    %357 = arith.cmpf oge, %355, %356 : vector<2x1xf32>
    %358 = arith.select %357, %349, %347 : vector<2x1xi1>, vector<2x1xi32>
    %359 = tpu.bitcast %358 : vector<2x1xi32> -> vector<2x1xf32>
    %360 = vector.broadcast %358 : vector<2x1xi32> to vector<2x1024xi32>
    %361 = arith.cmpi sgt, %16, %360 : vector<2x1024xi32>
    %cst_68 = arith.constant 0.000000e+00 : f32
    %362 = vector.broadcast %cst_68 : f32 to vector<2x1024xf32>
    %363 = arith.select %361, %15, %362 : vector<2x1024xi1>, vector<2x1024xf32>
    %cst_69 = arith.constant dense<0.000000e+00> : vector<2xf32>
    %364 = vector.multi_reduction <add>, %363, %cst_69 [1] : vector<2x1024xf32> to vector<2xf32>
    %365 = vector.shape_cast %364 : vector<2xf32> to vector<2x1xf32>
    %366 = arith.extui %361 : vector<2x1024xi1> to vector<2x1024xi32>
    %367 = arith.sitofp %366 : vector<2x1024xi32> to vector<2x1024xf32>
    %cst_70 = arith.constant dense<0.000000e+00> : vector<2xf32>
    %368 = vector.multi_reduction <add>, %367, %cst_70 [1] : vector<2x1024xf32> to vector<2xf32>
    %369 = vector.shape_cast %368 : vector<2xf32> to vector<2x1xf32>
    %cst_71 = arith.constant 5.120000e+02 : f32
    %370 = vector.broadcast %cst_71 : f32 to vector<2x1xf32>
    %371 = arith.subf %370, %369 : vector<2x1xf32>
    %372 = arith.mulf %371, %359 : vector<2x1xf32>
    %373 = arith.addf %365, %372 : vector<2x1xf32>
    %374 = vector.shape_cast %373 : vector<2x1xf32> to vector<2x1xf32>
    %375 = vector.broadcast %374 : vector<2x1xf32> to vector<2x128xf32>
    %c0_72 = arith.constant 0 : index
    %c0_73 = arith.constant 0 : index
    %376 = vector.load %arg3[%c0_72, %c0_73] : memref<2x128xf32, #tpu.memory_space<vmem>>, vector<2x128xf32>
    tpu.vector_store %arg3[%c0_72, %c0_73], %375 {strides = array<i32>} : memref<2x128xf32, #tpu.memory_space<vmem>>, vector<2x128xf32>,
    return
  }
  func.func @transform_0(%arg0: i32) -> (i32, i32) {
    %c0_i32 = arith.constant 0 : i32
    %c0_i32_0 = arith.constant 0 : i32
    return %arg0, %c0_i32 : i32, i32
  }
  func.func @transform_1(%arg0: i32) -> (i32, i32) {
    %c0_i32 = arith.constant 0 : i32
    %c0_i32_0 = arith.constant 0 : i32
    return %arg0, %c0_i32 : i32, i32
  }
  func.func @transform_2(%arg0: i32) -> (i32, i32) {
    %c0_i32 = arith.constant 0 : i32
    %c0_i32_0 = arith.constant 0 : i32
    return %arg0, %c0_i32 : i32, i32
  }
}

</mosaic_0001>

<llo_original>
// kernel: tpu_custom_call.1
$region0: #{tpu_custom_call.1}
  #allocation0 [shape = 'u32[]', space=smem, size = 0x4, offset = 0x4, fixed_abs, tag = 'smem constant byte address 0x4 - core index']
  #allocation1 [shape = 'u32[144,128]{1,0:T(1,128)}', space=vmem, size = 0x12000, scoped, tag = 'internal scratch']
  %s0 = inlined_call_operand.hbm [shape: f32[2,1024], index: 0, kind: input, shape index: {}]
  %s1 = inlined_call_operand.hbm [shape: f32[2,1024], index: 1, kind: input, shape index: {}]
  %s2 = inlined_call_operand.hbm [shape: f32[2,128], index: 2, kind: output, shape index: {}]
  %s3 = sld [smem:[#allocation0]]
  $region26: #{tpu_custom_call.1} parent=0
    _
  %s5 = ssub.s32 1, %s3
  %s6 = scalar_select 0, %s5, %s3
  $region1: #{tpu_custom_call.1} parent=0
    #allocation2 [shape = 'u8[8192]{0}', space=vmem, size = 0x2000, scoped, tag = 'input window, operand 0, single buffered']
    #allocation3 [shape = 's32[1]{0}', space=sflag, size = 0x4, scoped, tag = 'scoped memory for tpu_custom_call.1']
    #allocation4 [shape = 's32[1]{0}', space=sflag, size = 0x4, scoped, tag = 'scoped memory for tpu_custom_call.1']
    #allocation5 [shape = 'u8[8192]{0}', space=vmem, size = 0x2000, scoped, tag = 'input window, operand 1, single buffered']
    #allocation6 [shape = 's32[1]{0}', space=sflag, size = 0x4, scoped, tag = 'scoped memory for tpu_custom_call.1']
    #allocation7 [shape = 'u8[1024]{0}', space=vmem, size = 0x400, scoped, tag = 'output window, operand 0, single buffered']
    %7 = vsyncpa [#allocation3], 0
    %8 = vsyncpa [#allocation6], 0
    %9 = vsyncpa [#allocation4], 0
    // Predicated region
    $region2: #{tpu_custom_call.1} parent=1 // pred_check
      _
    $region3: #{tpu_custom_call.1} parent=1 // pred_check_branch
      %11 = sbr.rel (0) target = $region5
    $region4: #{tpu_custom_call.1} parent=1 // pred_region
      %s13 = ssub.s32 256, 256
      %14 = vsyncadd [#allocation3], %s13
      %s16 = sshll.u32 [#allocation2], 4
      %s17 = int_to_ptr.vmem [resolvable:$true] %s16
      %19 = dma.hbm_to_vmem [thread:$0]  %s0, 256, %s17, [#allocation3]
    $region5: #{tpu_custom_call.1} parent=1 // pred_fallthru
      _
    // Predicated region
    $region6: #{tpu_custom_call.1} parent=1 // pred_check
      _
    $region7: #{tpu_custom_call.1} parent=1 // pred_check_branch
      %21 = sbr.rel (0) target = $region9
    $region8: #{tpu_custom_call.1} parent=1 // pred_region
      %s23 = ssub.s32 256, 256
      %24 = vsyncadd [#allocation6], %s23
      %s26 = sshll.u32 [#allocation5], 4
      %s27 = int_to_ptr.vmem [resolvable:$true] %s26
      %29 = dma.hbm_to_vmem [thread:$0]  %s1, 256, %s27, [#allocation6]
    $region9: #{tpu_custom_call.1} parent=1 // pred_fallthru
      _
    // Predicated region
    $region10: #{tpu_custom_call.1} parent=1 // pred_check
      _
    $region11: #{tpu_custom_call.1} parent=1 // pred_check_branch
      %31 = sbr.rel (0) target = $region13
    $region12: #{tpu_custom_call.1} parent=1 // pred_region
      %32 = dma.done [#allocation3], 256
    $region13: #{tpu_custom_call.1} parent=1 // pred_fallthru
      _
    // Predicated region
    $region14: #{tpu_custom_call.1} parent=1 // pred_check
      _
    $region15: #{tpu_custom_call.1} parent=1 // pred_check_branch
      %34 = sbr.rel (0) target = $region17
    $region16: #{tpu_custom_call.1} parent=1 // pred_region
      %35 = dma.done [#allocation6], 256
    $region17: #{tpu_custom_call.1} parent=1 // pred_fallthru
      _
    %v36 = vld [vmem:[#allocation2] sm:$0xff]
    %v37 = vld [vmem:[#allocation2 + $0x8] sm:$0xff]
    %v38 = vld [vmem:[#allocation5] sm:$0xff]
    %v39 = vld [vmem:[#allocation5 + $0x8] sm:$0xff]
    %v40 = vmax.f32 %v36, 0.0
    %v41 = vmax.f32 %v37, 0.0
    %v42 = vmul.f32 %v36, %v38
    %v43 = vmul.f32 %v37, %v39
    %v44 = vsub.f32 %v40, %v42
    %v45 = vsub.f32 %v41, %v43
    %v46 = vand.u32 2147483647, %v36
    %v47 = vand.u32 2147483647, %v37
    %v48 = vsub.f32 0.0, %v46
    %v49 = vsub.f32 0.0, %v47
    %v50 = vmul.f32 %v48, 1.442695
    %v51 = vpow.pop %v50
    %v52 = vmul.f32 %v49, 1.442695
    %v53 = vpow.pop %v52
    %v54 = vadd.f32 %v51, 1.0
    %v55 = vadd.f32 %v53, 1.0
    %v56 = vlog2.pop %v54
    %v57 = vmul.f32 %v56, 0.6931472
    %v58 = vlog2.pop %v55
    %v59 = vmul.f32 %v58, 0.6931472
    %v60 = vadd.f32 %v44, %v57
    %v61 = vadd.f32 %v45, %v59
    %v62 = vmax.f32 %v60, 0.0
    %v63 = vmax.f32 %v61, 0.0
    %v66 = vcombine.high %v62, %v62
    %v68 = vunpack.c.l.s4 1983009808
    %v69 = vunpack.c.0.s8 %v68
    %v70 = vlaneseq
    %v71 = vshrl.u32 %v70, 7
    %v72 = vsub.s32 %v69, %v71
    %v73 = vrot.slane %v62, %v72
    %v75 = vunpack.c.l.s4 1983009808
    %v76 = vunpack.c.0.s8 %v75
    %v77 = vlaneseq
    %v78 = vshrl.u32 %v77, 7
    %v79 = vsub.s32 %v76, %v78
    %v80 = vrot.slane %v66, %v79
    %v81 = vcombine.high %v73, %v73
    %v82 = vcombine.high %v80, %v80
    %v83 = vcombine.high %v63, %v63
    %v85 = vunpack.c.l.s4 1983009808
    %v86 = vunpack.c.0.s8 %v85
    %v87 = vlaneseq
    %v88 = vshrl.u32 %v87, 7
    %v89 = vsub.s32 %v86, %v88
    %v90 = vrot.slane %v63, %v89
    %v92 = vunpack.c.l.s4 1983009808
    %v93 = vunpack.c.0.s8 %v92
    %v94 = vlaneseq
    %v95 = vshrl.u32 %v94, 7
    %v96 = vsub.s32 %v93, %v95
    %v97 = vrot.slane %v83, %v96
    %v98 = vcombine.high %v90, %v90
    %v99 = vcombine.high %v97, %v97
    %vm100 = vcmp.ge.s32.totalorder %v73, 1073741824
    %vm101 = vcmp.ge.s32.totalorder %v81, 1073741824
    %vm102 = vcmp.ge.s32.totalorder %v80, 1073741824
    %vm103 = vcmp.ge.s32.totalorder %v82, 1073741824
    %vm104 = vcmp.ge.s32.totalorder %v90, 1073741824
    %vm105 = vcmp.ge.s32.totalorder %v98, 1073741824
    %vm106 = vcmp.ge.s32.totalorder %v97, 1073741824
    %vm107 = vcmp.ge.s32.totalorder %v99, 1073741824
    %v108 = vsel %vm100, 1, 0
    %v109 = vsel %vm101, 1, 0
    %v110 = vsel %vm102, 1, 0
    %v111 = vsel %vm103, 1, 0
    %v112 = vsel %vm104, 1, 0
    %v113 = vsel %vm105, 1, 0
    %v114 = vsel %vm106, 1, 0
    %v115 = vsel %vm107, 1, 0
    %v116 = vcvt.s32.f32 %v108
    %v117 = vcvt.s32.f32 %v109
    %v118 = vcvt.s32.f32 %v110
    %v119 = vcvt.s32.f32 %v111
    %v120 = vcvt.s32.f32 %v112
    %v121 = vcvt.s32.f32 %v113
    %v122 = vcvt.s32.f32 %v114
    %v123 = vcvt.s32.f32 %v115
    %vm124 = vcmask 1041408
    %v125 = vsel %vm124, %v116, 0.0
    %v126 = vsel %vm124, %v117, 0.0
    %v127 = vadd.f32 %v125, %v126
    %v128 = vsel %vm124, %v118, 0.0
    %v129 = vadd.f32 %v127, %v128
    %v130 = vsel %vm124, %v119, 0.0
    %v131 = vadd.f32 %v129, %v130
    %v132 = vsel %vm124, %v120, 0.0
    %v133 = vadd.f32 %v131, %v132
    %v134 = vsel %vm124, %v121, 0.0
    %v135 = vadd.f32 %v133, %v134
    %v136 = vsel %vm124, %v122, 0.0
    %v137 = vadd.f32 %v135, %v136
    %v138 = vsel %vm124, %v123, 0.0
    %v139 = vadd.f32 %v137, %v138
    %140 = vadd.xlane.f32.xlu0 %v139
    %v141 = vpop.xlane.xlu0 %140
    %vm142 = vcmp.ge.f32.partialorder %v141, 512.0
    %v143 = vsel %vm142, 1073741824, 0
    %v144 = vor.u32 %v143, 536870912
    %vm145 = vcmp.ge.s32.totalorder %v73, %v144
    %vm146 = vcmp.ge.s32.totalorder %v81, %v144
    %vm147 = vcmp.ge.s32.totalorder %v80, %v144
    %vm148 = vcmp.ge.s32.totalorder %v82, %v144
    %vm149 = vcmp.ge.s32.totalorder %v90, %v144
    %vm150 = vcmp.ge.s32.totalorder %v98, %v144
    %vm151 = vcmp.ge.s32.totalorder %v97, %v144
    %vm152 = vcmp.ge.s32.totalorder %v99, %v144
    %v153 = vsel %vm145, 1, 0
    %v154 = vsel %vm146, 1, 0
    %v155 = vsel %vm147, 1, 0
    %v156 = vsel %vm148, 1, 0
    %v157 = vsel %vm149, 1, 0
    %v158 = vsel %vm150, 1, 0
    %v159 = vsel %vm151, 1, 0
    %v160 = vsel %vm152, 1, 0
    %v161 = vcvt.s32.f32 %v153
    %v162 = vcvt.s32.f32 %v154
    %v163 = vcvt.s32.f32 %v155
    %v164 = vcvt.s32.f32 %v156
    %v165 = vcvt.s32.f32 %v157
    %v166 = vcvt.s32.f32 %v158
    %v167 = vcvt.s32.f32 %v159
    %v168 = vcvt.s32.f32 %v160
    %v169 = vsel %vm124, %v161, 0.0
    %v170 = vsel %vm124, %v162, 0.0
    %v171 = vadd.f32 %v169, %v170
    %v172 = vsel %vm124, %v163, 0.0
    %v173 = vadd.f32 %v171, %v172
    %v174 = vsel %vm124, %v164, 0.0
    %v175 = vadd.f32 %v173, %v174
    %v176 = vsel %vm124, %v165, 0.0
    %v177 = vadd.f32 %v175, %v176
    %v178 = vsel %vm124, %v166, 0.0
    %v179 = vadd.f32 %v177, %v178
    %v180 = vsel %vm124, %v167, 0.0
    %v181 = vadd.f32 %v179, %v180
    %v182 = vsel %vm124, %v168, 0.0
    %v183 = vadd.f32 %v181, %v182
    %184 = vadd.xlane.f32.xlu0 %v183
    %v185 = vpop.xlane.xlu0 %184
    %vm186 = vcmp.ge.f32.partialorder %v185, 512.0
    %v187 = vsel %vm186, %v144, %v143
    %v188 = vor.u32 %v187, 268435456
    %vm189 = vcmp.ge.s32.totalorder %v73, %v188
    %vm190 = vcmp.ge.s32.totalorder %v81, %v188
    %vm191 = vcmp.ge.s32.totalorder %v80, %v188
    %vm192 = vcmp.ge.s32.totalorder %v82, %v188
    %vm193 = vcmp.ge.s32.totalorder %v90, %v188
    %vm194 = vcmp.ge.s32.totalorder %v98, %v188
    %vm195 = vcmp.ge.s32.totalorder %v97, %v188
    %vm196 = vcmp.ge.s32.totalorder %v99, %v188
    %v197 = vsel %vm189, 1, 0
    %v198 = vsel %vm190, 1, 0
    %v199 = vsel %vm191, 1, 0
    %v200 = vsel %vm192, 1, 0
    %v201 = vsel %vm193, 1, 0
    %v202 = vsel %vm194, 1, 0
    %v203 = vsel %vm195, 1, 0
    %v204 = vsel %vm196, 1, 0
    %v205 = vcvt.s32.f32 %v197
    %v206 = vcvt.s32.f32 %v198
    %v207 = vcvt.s32.f32 %v199
    %v208 = vcvt.s32.f32 %v200
    %v209 = vcvt.s32.f32 %v201
    %v210 = vcvt.s32.f32 %v202
    %v211 = vcvt.s32.f32 %v203
    %v212 = vcvt.s32.f32 %v204
    %v213 = vsel %vm124, %v205, 0.0
    %v214 = vsel %vm124, %v206, 0.0
    %v215 = vadd.f32 %v213, %v214
    %v216 = vsel %vm124, %v207, 0.0
    %v217 = vadd.f32 %v215, %v216
    %v218 = vsel %vm124, %v208, 0.0
    %v219 = vadd.f32 %v217, %v218
    %v220 = vsel %vm124, %v209, 0.0
    %v221 = vadd.f32 %v219, %v220
    %v222 = vsel %vm124, %v210, 0.0
    %v223 = vadd.f32 %v221, %v222
    %v224 = vsel %vm124, %v211, 0.0
    %v225 = vadd.f32 %v223, %v224
    %v226 = vsel %vm124, %v212, 0.0
    %v227 = vadd.f32 %v225, %v226
    %228 = vadd.xlane.f32.xlu0 %v227
    %v229 = vpop.xlane.xlu0 %228
    %vm230 = vcmp.ge.f32.partialorder %v229, 512.0
    %v231 = vsel %vm230, %v188, %v187
    %v232 = vor.u32 %v231, 134217728
    %vm233 = vcmp.ge.s32.totalorder %v73, %v232
    %vm234 = vcmp.ge.s32.totalorder %v81, %v232
    %vm235 = vcmp.ge.s32.totalorder %v80, %v232
    %vm236 = vcmp.ge.s32.totalorder %v82, %v232
    %vm237 = vcmp.ge.s32.totalorder %v90, %v232
    %vm238 = vcmp.ge.s32.totalorder %v98, %v232
    %vm239 = vcmp.ge.s32.totalorder %v97, %v232
    %vm240 = vcmp.ge.s32.totalorder %v99, %v232
    %v241 = vsel %vm233, 1, 0
    %v242 = vsel %vm234, 1, 0
    %v243 = vsel %vm235, 1, 0
    %v244 = vsel %vm236, 1, 0
    %v245 = vsel %vm237, 1, 0
    %v246 = vsel %vm238, 1, 0
    %v247 = vsel %vm239, 1, 0
    %v248 = vsel %vm240, 1, 0
    %v249 = vcvt.s32.f32 %v241
    %v250 = vcvt.s32.f32 %v242
    %v251 = vcvt.s32.f32 %v243
    %v252 = vcvt.s32.f32 %v244
    %v253 = vcvt.s32.f32 %v245
    %v254 = vcvt.s32.f32 %v246
    %v255 = vcvt.s32.f32 %v247
    %v256 = vcvt.s32.f32 %v248
    %v257 = vsel %vm124, %v249, 0.0
    %v258 = vsel %vm124, %v250, 0.0
    %v259 = vadd.f32 %v257, %v258
    %v260 = vsel %vm124, %v251, 0.0
    %v261 = vadd.f32 %v259, %v260
    %v262 = vsel %vm124, %v252, 0.0
    %v263 = vadd.f32 %v261, %v262
    %v264 = vsel %vm124, %v253, 0.0
    %v265 = vadd.f32 %v263, %v264
    %v266 = vsel %vm124, %v254, 0.0
    %v267 = vadd.f32 %v265, %v266
    %v268 = vsel %vm124, %v255, 0.0
    %v269 = vadd.f32 %v267, %v268
    %v270 = vsel %vm124, %v256, 0.0
    %v271 = vadd.f32 %v269, %v270
    %272 = vadd.xlane.f32.xlu0 %v271
    %v273 = vpop.xlane.xlu0 %272
    %vm274 = vcmp.ge.f32.partialorder %v273, 512.0
    %v275 = vsel %vm274, %v232, %v231
    %v276 = vor.u32 %v275, 67108864
    %vm277 = vcmp.ge.s32.totalorder %v73, %v276
    %vm278 = vcmp.ge.s32.totalorder %v81, %v276
    %vm279 = vcmp.ge.s32.totalorder %v80, %v276
    %vm280 = vcmp.ge.s32.totalorder %v82, %v276
    %vm281 = vcmp.ge.s32.totalorder %v90, %v276
    %vm282 = vcmp.ge.s32.totalorder %v98, %v276
    %vm283 = vcmp.ge.s32.totalorder %v97, %v276
    %vm284 = vcmp.ge.s32.totalorder %v99, %v276
    %v285 = vsel %vm277, 1, 0
    %v286 = vsel %vm278, 1, 0
    %v287 = vsel %vm279, 1, 0
    %v288 = vsel %vm280, 1, 0
    %v289 = vsel %vm281, 1, 0
    %v290 = vsel %vm282, 1, 0
    %v291 = vsel %vm283, 1, 0
    %v292 = vsel %vm284, 1, 0
    %v293 = vcvt.s32.f32 %v285
    %v294 = vcvt.s32.f32 %v286
    %v295 = vcvt.s32.f32 %v287
    %v296 = vcvt.s32.f32 %v288
    %v297 = vcvt.s32.f32 %v289
    %v298 = vcvt.s32.f32 %v290
    %v299 = vcvt.s32.f32 %v291
    %v300 = vcvt.s32.f32 %v292
    %v301 = vsel %vm124, %v293, 0.0
    %v302 = vsel %vm124, %v294, 0.0
    %v303 = vadd.f32 %v301, %v302
    %v304 = vsel %vm124, %v295, 0.0
    %v305 = vadd.f32 %v303, %v304
    %v306 = vsel %vm124, %v296, 0.0
    %v307 = vadd.f32 %v305, %v306
    %v308 = vsel %vm124, %v297, 0.0
    %v309 = vadd.f32 %v307, %v308
    %v310 = vsel %vm124, %v298, 0.0
    %v311 = vadd.f32 %v309, %v310
    %v312 = vsel %vm124, %v299, 0.0
    %v313 = vadd.f32 %v311, %v312
    %v314 = vsel %vm124, %v300, 0.0
    %v315 = vadd.f32 %v313, %v314
    %316 = vadd.xlane.f32.xlu0 %v315
    %v317 = vpop.xlane.xlu0 %316
    %vm318 = vcmp.ge.f32.partialorder %v317, 512.0
    %v319 = vsel %vm318, %v276, %v275
    %v320 = vor.u32 %v319, 33554432
    %vm321 = vcmp.ge.s32.totalorder %v73, %v320
    %vm322 = vcmp.ge.s32.totalorder %v81, %v320
    %vm323 = vcmp.ge.s32.totalorder %v80, %v320
    %vm324 = vcmp.ge.s32.totalorder %v82, %v320
    %vm325 = vcmp.ge.s32.totalorder %v90, %v320
    %vm326 = vcmp.ge.s32.totalorder %v98, %v320
    %vm327 = vcmp.ge.s32.totalorder %v97, %v320
    %vm328 = vcmp.ge.s32.totalorder %v99, %v320
    %v329 = vsel %vm321, 1, 0
    %v330 = vsel %vm322, 1, 0
    %v331 = vsel %vm323, 1, 0
    %v332 = vsel %vm324, 1, 0
    %v333 = vsel %vm325, 1, 0
    %v334 = vsel %vm326, 1, 0
    %v335 = vsel %vm327, 1, 0
    %v336 = vsel %vm328, 1, 0
    %v337 = vcvt.s32.f32 %v329
    %v338 = vcvt.s32.f32 %v330
    %v339 = vcvt.s32.f32 %v331
    %v340 = vcvt.s32.f32 %v332
    %v341 = vcvt.s32.f32 %v333
    %v342 = vcvt.s32.f32 %v334
    %v343 = vcvt.s32.f32 %v335
    %v344 = vcvt.s32.f32 %v336
    %v345 = vsel %vm124, %v337, 0.0
    %v346 = vsel %vm124, %v338, 0.0
    %v347 = vadd.f32 %v345, %v346
    %v348 = vsel %vm124, %v339, 0.0
    %v349 = vadd.f32 %v347, %v348
    %v350 = vsel %vm124, %v340, 0.0
    %v351 = vadd.f32 %v349, %v350
    %v352 = vsel %vm124, %v341, 0.0
    %v353 = vadd.f32 %v351, %v352
    %v354 = vsel %vm124, %v342, 0.0
    %v355 = vadd.f32 %v353, %v354
    %v356 = vsel %vm124, %v343, 0.0
    %v357 = vadd.f32 %v355, %v356
    %v358 = vsel %vm124, %v344, 0.0
    %v359 = vadd.f32 %v357, %v358
    %360 = vadd.xlane.f32.xlu0 %v359
    %v361 = vpop.xlane.xlu0 %360
    %vm362 = vcmp.ge.f32.partialorder %v361, 512.0
    %v363 = vsel %vm362, %v320, %v319
    %v364 = vor.u32 %v363, 16777216
    %vm365 = vcmp.ge.s32.totalorder %v73, %v364
    %vm366 = vcmp.ge.s32.totalorder %v81, %v364
    %vm367 = vcmp.ge.s32.totalorder %v80, %v364
    %vm368 = vcmp.ge.s32.totalorder %v82, %v364
    %vm369 = vcmp.ge.s32.totalorder %v90, %v364
    %vm370 = vcmp.ge.s32.totalorder %v98, %v364
    %vm371 = vcmp.ge.s32.totalorder %v97, %v364
    %vm372 = vcmp.ge.s32.totalorder %v99, %v364
    %v373 = vsel %vm365, 1, 0
    %v374 = vsel %vm366, 1, 0
    %v375 = vsel %vm367, 1, 0
    %v376 = vsel %vm368, 1, 0
    %v377 = vsel %vm369, 1, 0
    %v378 = vsel %vm370, 1, 0
    %v379 = vsel %vm371, 1, 0
    %v380 = vsel %vm372, 1, 0
    %v381 = vcvt.s32.f32 %v373
    %v382 = vcvt.s32.f32 %v374
    %v383 = vcvt.s32.f32 %v375
    %v384 = vcvt.s32.f32 %v376
    %v385 = vcvt.s32.f32 %v377
    %v386 = vcvt.s32.f32 %v378
    %v387 = vcvt.s32.f32 %v379
    %v388 = vcvt.s32.f32 %v380
    %v389 = vsel %vm124, %v381, 0.0
    %v390 = vsel %vm124, %v382, 0.0
    %v391 = vadd.f32 %v389, %v390
    %v392 = vsel %vm124, %v383, 0.0
    %v393 = vadd.f32 %v391, %v392
    %v394 = vsel %vm124, %v384, 0.0
    %v395 = vadd.f32 %v393, %v394
    %v396 = vsel %vm124, %v385, 0.0
    %v397 = vadd.f32 %v395, %v396
    %v398 = vsel %vm124, %v386, 0.0
    %v399 = vadd.f32 %v397, %v398
    %v400 = vsel %vm124, %v387, 0.0
    %v401 = vadd.f32 %v399, %v400
    %v402 = vsel %vm124, %v388, 0.0
    %v403 = vadd.f32 %v401, %v402
    %404 = vadd.xlane.f32.xlu0 %v403
    %v405 = vpop.xlane.xlu0 %404
    %vm406 = vcmp.ge.f32.partialorder %v405, 512.0
    %v407 = vsel %vm406, %v364, %v363
    %v408 = vor.u32 %v407, 8388608
    %vm409 = vcmp.ge.s32.totalorder %v73, %v408
    %vm410 = vcmp.ge.s32.totalorder %v81, %v408
    %vm411 = vcmp.ge.s32.totalorder %v80, %v408
    %vm412 = vcmp.ge.s32.totalorder %v82, %v408
    %vm413 = vcmp.ge.s32.totalorder %v90, %v408
    %vm414 = vcmp.ge.s32.totalorder %v98, %v408
    %vm415 = vcmp.ge.s32.totalorder %v97, %v408
    %vm416 = vcmp.ge.s32.totalorder %v99, %v408
    %v417 = vsel %vm409, 1, 0
    %v418 = vsel %vm410, 1, 0
    %v419 = vsel %vm411, 1, 0
    %v420 = vsel %vm412, 1, 0
    %v421 = vsel %vm413, 1, 0
    %v422 = vsel %vm414, 1, 0
    %v423 = vsel %vm415, 1, 0
    %v424 = vsel %vm416, 1, 0
    %v425 = vcvt.s32.f32 %v417
    %v426 = vcvt.s32.f32 %v418
    %v427 = vcvt.s32.f32 %v419
    %v428 = vcvt.s32.f32 %v420
    %v429 = vcvt.s32.f32 %v421
    %v430 = vcvt.s32.f32 %v422
    %v431 = vcvt.s32.f32 %v423
    %v432 = vcvt.s32.f32 %v424
    %v433 = vsel %vm124, %v425, 0.0
    %v434 = vsel %vm124, %v426, 0.0
    %v435 = vadd.f32 %v433, %v434
    %v436 = vsel %vm124, %v427, 0.0
    %v437 = vadd.f32 %v435, %v436
    %v438 = vsel %vm124, %v428, 0.0
    %v439 = vadd.f32 %v437, %v438
    %v440 = vsel %vm124, %v429, 0.0
    %v441 = vadd.f32 %v439, %v440
    %v442 = vsel %vm124, %v430, 0.0
    %v443 = vadd.f32 %v441, %v442
    %v444 = vsel %vm124, %v431, 0.0
    %v445 = vadd.f32 %v443, %v444
    %v446 = vsel %vm124, %v432, 0.0
    %v447 = vadd.f32 %v445, %v446
    %448 = vadd.xlane.f32.xlu0 %v447
    %v449 = vpop.xlane.xlu0 %448
    %vm450 = vcmp.ge.f32.partialorder %v449, 512.0
    %v451 = vsel %vm450, %v408, %v407
    %v452 = vor.u32 %v451, 4194304
    %vm453 = vcmp.ge.s32.totalorder %v73, %v452
    %vm454 = vcmp.ge.s32.totalorder %v81, %v452
    %vm455 = vcmp.ge.s32.totalorder %v80, %v452
    %vm456 = vcmp.ge.s32.totalorder %v82, %v452
    %vm457 = vcmp.ge.s32.totalorder %v90, %v452
    %vm458 = vcmp.ge.s32.totalorder %v98, %v452
    %vm459 = vcmp.ge.s32.totalorder %v97, %v452
    %vm460 = vcmp.ge.s32.totalorder %v99, %v452
    %v461 = vsel %vm453, 1, 0
    %v462 = vsel %vm454, 1, 0
    %v463 = vsel %vm455, 1, 0
    %v464 = vsel %vm456, 1, 0
    %v465 = vsel %vm457, 1, 0
    %v466 = vsel %vm458, 1, 0
    %v467 = vsel %vm459, 1, 0
    %v468 = vsel %vm460, 1, 0
    %v469 = vcvt.s32.f32 %v461
    %v470 = vcvt.s32.f32 %v462
    %v471 = vcvt.s32.f32 %v463
    %v472 = vcvt.s32.f32 %v464
    %v473 = vcvt.s32.f32 %v465
    %v474 = vcvt.s32.f32 %v466
    %v475 = vcvt.s32.f32 %v467
    %v476 = vcvt.s32.f32 %v468
    %v477 = vsel %vm124, %v469, 0.0
    %v478 = vsel %vm124, %v470, 0.0
    %v479 = vadd.f32 %v477, %v478
    %v480 = vsel %vm124, %v471, 0.0
    %v481 = vadd.f32 %v479, %v480
    %v482 = vsel %vm124, %v472, 0.0
    %v483 = vadd.f32 %v481, %v482
    %v484 = vsel %vm124, %v473, 0.0
    %v485 = vadd.f32 %v483, %v484
    %v486 = vsel %vm124, %v474, 0.0
    %v487 = vadd.f32 %v485, %v486
    %v488 = vsel %vm124, %v475, 0.0
    %v489 = vadd.f32 %v487, %v488
    %v490 = vsel %vm124, %v476, 0.0
    %v491 = vadd.f32 %v489, %v490
    %492 = vadd.xlane.f32.xlu0 %v491
    %v493 = vpop.xlane.xlu0 %492
    %vm494 = vcmp.ge.f32.partialorder %v493, 512.0
    %v495 = vsel %vm494, %v452, %v451
    %v496 = vor.u32 %v495, 2097152
    %vm497 = vcmp.ge.s32.totalorder %v73, %v496
    %vm498 = vcmp.ge.s32.totalorder %v81, %v496
    %vm499 = vcmp.ge.s32.totalorder %v80, %v496
    %vm500 = vcmp.ge.s32.totalorder %v82, %v496
    %vm501 = vcmp.ge.s32.totalorder %v90, %v496
    %vm502 = vcmp.ge.s32.totalorder %v98, %v496
    %vm503 = vcmp.ge.s32.totalorder %v97, %v496
    %vm504 = vcmp.ge.s32.totalorder %v99, %v496
    %v505 = vsel %vm497, 1, 0
    %v506 = vsel %vm498, 1, 0
    %v507 = vsel %vm499, 1, 0
    %v508 = vsel %vm500, 1, 0
    %v509 = vsel %vm501, 1, 0
    %v510 = vsel %vm502, 1, 0
    %v511 = vsel %vm503, 1, 0
    %v512 = vsel %vm504, 1, 0
    %v513 = vcvt.s32.f32 %v505
    %v514 = vcvt.s32.f32 %v506
    %v515 = vcvt.s32.f32 %v507
    %v516 = vcvt.s32.f32 %v508
    %v517 = vcvt.s32.f32 %v509
    %v518 = vcvt.s32.f32 %v510
    %v519 = vcvt.s32.f32 %v511
    %v520 = vcvt.s32.f32 %v512
    %v521 = vsel %vm124, %v513, 0.0
    %v522 = vsel %vm124, %v514, 0.0
    %v523 = vadd.f32 %v521, %v522
    %v524 = vsel %vm124, %v515, 0.0
    %v525 = vadd.f32 %v523, %v524
    %v526 = vsel %vm124, %v516, 0.0
    %v527 = vadd.f32 %v525, %v526
    %v528 = vsel %vm124, %v517, 0.0
    %v529 = vadd.f32 %v527, %v528
    %v530 = vsel %vm124, %v518, 0.0
    %v531 = vadd.f32 %v529, %v530
    %v532 = vsel %vm124, %v519, 0.0
    %v533 = vadd.f32 %v531, %v532
    %v534 = vsel %vm124, %v520, 0.0
    %v535 = vadd.f32 %v533, %v534
    %536 = vadd.xlane.f32.xlu0 %v535
    %v537 = vpop.xlane.xlu0 %536
    %vm538 = vcmp.ge.f32.partialorder %v537, 512.0
    %v539 = vsel %vm538, %v496, %v495
    %v540 = vor.u32 %v539, 1048576
    %vm541 = vcmp.ge.s32.totalorder %v73, %v540
    %vm542 = vcmp.ge.s32.totalorder %v81, %v540
    %vm543 = vcmp.ge.s32.totalorder %v80, %v540
    %vm544 = vcmp.ge.s32.totalorder %v82, %v540
    %vm545 = vcmp.ge.s32.totalorder %v90, %v540
    %vm546 = vcmp.ge.s32.totalorder %v98, %v540
    %vm547 = vcmp.ge.s32.totalorder %v97, %v540
    %vm548 = vcmp.ge.s32.totalorder %v99, %v540
    %v549 = vsel %vm541, 1, 0
    %v550 = vsel %vm542, 1, 0
    %v551 = vsel %vm543, 1, 0
    %v552 = vsel %vm544, 1, 0
    %v553 = vsel %vm545, 1, 0
    %v554 = vsel %vm546, 1, 0
    %v555 = vsel %vm547, 1, 0
    %v556 = vsel %vm548, 1, 0
    %v557 = vcvt.s32.f32 %v549
    %v558 = vcvt.s32.f32 %v550
    %v559 = vcvt.s32.f32 %v551
    %v560 = vcvt.s32.f32 %v552
    %v561 = vcvt.s32.f32 %v553
    %v562 = vcvt.s32.f32 %v554
    %v563 = vcvt.s32.f32 %v555
    %v564 = vcvt.s32.f32 %v556
    %v565 = vsel %vm124, %v557, 0.0
    %v566 = vsel %vm124, %v558, 0.0
    %v567 = vadd.f32 %v565, %v566
    %v568 = vsel %vm124, %v559, 0.0
    %v569 = vadd.f32 %v567, %v568
    %v570 = vsel %vm124, %v560, 0.0
    %v571 = vadd.f32 %v569, %v570
    %v572 = vsel %vm124, %v561, 0.0
    %v573 = vadd.f32 %v571, %v572
    %v574 = vsel %vm124, %v562, 0.0
    %v575 = vadd.f32 %v573, %v574
    %v576 = vsel %vm124, %v563, 0.0
    %v577 = vadd.f32 %v575, %v576
    %v578 = vsel %vm124, %v564, 0.0
    %v579 = vadd.f32 %v577, %v578
    %580 = vadd.xlane.f32.xlu0 %v579
    %v581 = vpop.xlane.xlu0 %580
    %vm582 = vcmp.ge.f32.partialorder %v581, 512.0
    %v583 = vsel %vm582, %v540, %v539
    %v584 = vor.u32 %v583, 524288
    %vm585 = vcmp.ge.s32.totalorder %v73, %v584
    %vm586 = vcmp.ge.s32.totalorder %v81, %v584
    %vm587 = vcmp.ge.s32.totalorder %v80, %v584
    %vm588 = vcmp.ge.s32.totalorder %v82, %v584
    %vm589 = vcmp.ge.s32.totalorder %v90, %v584
    %vm590 = vcmp.ge.s32.totalorder %v98, %v584
    %vm591 = vcmp.ge.s32.totalorder %v97, %v584
    %vm592 = vcmp.ge.s32.totalorder %v99, %v584
    %v593 = vsel %vm585, 1, 0
    %v594 = vsel %vm586, 1, 0
    %v595 = vsel %vm587, 1, 0
    %v596 = vsel %vm588, 1, 0
    %v597 = vsel %vm589, 1, 0
    %v598 = vsel %vm590, 1, 0
    %v599 = vsel %vm591, 1, 0
    %v600 = vsel %vm592, 1, 0
    %v601 = vcvt.s32.f32 %v593
    %v602 = vcvt.s32.f32 %v594
    %v603 = vcvt.s32.f32 %v595
    %v604 = vcvt.s32.f32 %v596
    %v605 = vcvt.s32.f32 %v597
    %v606 = vcvt.s32.f32 %v598
    %v607 = vcvt.s32.f32 %v599
    %v608 = vcvt.s32.f32 %v600
    %v609 = vsel %vm124, %v601, 0.0
    %v610 = vsel %vm124, %v602, 0.0
    %v611 = vadd.f32 %v609, %v610
    %v612 = vsel %vm124, %v603, 0.0
    %v613 = vadd.f32 %v611, %v612
    %v614 = vsel %vm124, %v604, 0.0
    %v615 = vadd.f32 %v613, %v614
    %v616 = vsel %vm124, %v605, 0.0
    %v617 = vadd.f32 %v615, %v616
    %v618 = vsel %vm124, %v606, 0.0
    %v619 = vadd.f32 %v617, %v618
    %v620 = vsel %vm124, %v607, 0.0
    %v621 = vadd.f32 %v619, %v620
    %v622 = vsel %vm124, %v608, 0.0
    %v623 = vadd.f32 %v621, %v622
    %624 = vadd.xlane.f32.xlu0 %v623
    %v625 = vpop.xlane.xlu0 %624
    %vm626 = vcmp.ge.f32.partialorder %v625, 512.0
    %v627 = vsel %vm626, %v584, %v583
    %v628 = vor.u32 %v627, 262144
    %vm629 = vcmp.ge.s32.totalorder %v73, %v628
    %vm630 = vcmp.ge.s32.totalorder %v81, %v628
    %vm631 = vcmp.ge.s32.totalorder %v80, %v628
    %vm632 = vcmp.ge.s32.totalorder %v82, %v628
    %vm633 = vcmp.ge.s32.totalorder %v90, %v628
    %vm634 = vcmp.ge.s32.totalorder %v98, %v628
    %vm635 = vcmp.ge.s32.totalorder %v97, %v628
    %vm636 = vcmp.ge.s32.totalorder %v99, %v628
    %v637 = vsel %vm629, 1, 0
    %v638 = vsel %vm630, 1, 0
    %v639 = vsel %vm631, 1, 0
    %v640 = vsel %vm632, 1, 0
    %v641 = vsel %vm633, 1, 0
    %v642 = vsel %vm634, 1, 0
    %v643 = vsel %vm635, 1, 0
    %v644 = vsel %vm636, 1, 0
    %v645 = vcvt.s32.f32 %v637
    %v646 = vcvt.s32.f32 %v638
    %v647 = vcvt.s32.f32 %v639
    %v648 = vcvt.s32.f32 %v640
    %v649 = vcvt.s32.f32 %v641
    %v650 = vcvt.s32.f32 %v642
    %v651 = vcvt.s32.f32 %v643
    %v652 = vcvt.s32.f32 %v644
    %v653 = vsel %vm124, %v645, 0.0
    %v654 = vsel %vm124, %v646, 0.0
    %v655 = vadd.f32 %v653, %v654
    %v656 = vsel %vm124, %v647, 0.0
    %v657 = vadd.f32 %v655, %v656
    %v658 = vsel %vm124, %v648, 0.0
    %v659 = vadd.f32 %v657, %v658
    %v660 = vsel %vm124, %v649, 0.0
    %v661 = vadd.f32 %v659, %v660
    %v662 = vsel %vm124, %v650, 0.0
    %v663 = vadd.f32 %v661, %v662
    %v664 = vsel %vm124, %v651, 0.0
    %v665 = vadd.f32 %v663, %v664
    %v666 = vsel %vm124, %v652, 0.0
    %v667 = vadd.f32 %v665, %v666
    %668 = vadd.xlane.f32.xlu0 %v667
    %v669 = vpop.xlane.xlu0 %668
    %vm670 = vcmp.ge.f32.partialorder %v669, 512.0
    %v671 = vsel %vm670, %v628, %v627
    %v672 = vor.u32 %v671, 131072
    %vm673 = vcmp.ge.s32.totalorder %v73, %v672
    %vm674 = vcmp.ge.s32.totalorder %v81, %v672
    %vm675 = vcmp.ge.s32.totalorder %v80, %v672
    %vm676 = vcmp.ge.s32.totalorder %v82, %v672
    %vm677 = vcmp.ge.s32.totalorder %v90, %v672
    %vm678 = vcmp.ge.s32.totalorder %v98, %v672
    %vm679 = vcmp.ge.s32.totalorder %v97, %v672
    %vm680 = vcmp.ge.s32.totalorder %v99, %v672
    %v681 = vsel %vm673, 1, 0
    %v682 = vsel %vm674, 1, 0
    %v683 = vsel %vm675, 1, 0
    %v684 = vsel %vm676, 1, 0
    %v685 = vsel %vm677, 1, 0
    %v686 = vsel %vm678, 1, 0
    %v687 = vsel %vm679, 1, 0
    %v688 = vsel %vm680, 1, 0
    %v689 = vcvt.s32.f32 %v681
    %v690 = vcvt.s32.f32 %v682
    %v691 = vcvt.s32.f32 %v683
    %v692 = vcvt.s32.f32 %v684
    %v693 = vcvt.s32.f32 %v685
    %v694 = vcvt.s32.f32 %v686
    %v695 = vcvt.s32.f32 %v687
    %v696 = vcvt.s32.f32 %v688
    %v697 = vsel %vm124, %v689, 0.0
    %v698 = vsel %vm124, %v690, 0.0
    %v699 = vadd.f32 %v697, %v698
    %v700 = vsel %vm124, %v691, 0.0
    %v701 = vadd.f32 %v699, %v700
    %v702 = vsel %vm124, %v692, 0.0
    %v703 = vadd.f32 %v701, %v702
    %v704 = vsel %vm124, %v693, 0.0
    %v705 = vadd.f32 %v703, %v704
    %v706 = vsel %vm124, %v694, 0.0
    %v707 = vadd.f32 %v705, %v706
    %v708 = vsel %vm124, %v695, 0.0
    %v709 = vadd.f32 %v707, %v708
    %v710 = vsel %vm124, %v696, 0.0
    %v711 = vadd.f32 %v709, %v710
    %712 = vadd.xlane.f32.xlu0 %v711
    %v713 = vpop.xlane.xlu0 %712
    %vm714 = vcmp.ge.f32.partialorder %v713, 512.0
    %v715 = vsel %vm714, %v672, %v671
    %v716 = vor.u32 %v715, 65536
    %vm717 = vcmp.ge.s32.totalorder %v73, %v716
    %vm718 = vcmp.ge.s32.totalorder %v81, %v716
    %vm719 = vcmp.ge.s32.totalorder %v80, %v716
    %vm720 = vcmp.ge.s32.totalorder %v82, %v716
    %vm721 = vcmp.ge.s32.totalorder %v90, %v716
    %vm722 = vcmp.ge.s32.totalorder %v98, %v716
    %vm723 = vcmp.ge.s32.totalorder %v97, %v716
    %vm724 = vcmp.ge.s32.totalorder %v99, %v716
    %v725 = vsel %vm717, 1, 0
    %v726 = vsel %vm718, 1, 0
    %v727 = vsel %vm719, 1, 0
    %v728 = vsel %vm720, 1, 0
    %v729 = vsel %vm721, 1, 0
    %v730 = vsel %vm722, 1, 0
    %v731 = vsel %vm723, 1, 0
    %v732 = vsel %vm724, 1, 0
    %v733 = vcvt.s32.f32 %v725
    %v734 = vcvt.s32.f32 %v726
    %v735 = vcvt.s32.f32 %v727
    %v736 = vcvt.s32.f32 %v728
    %v737 = vcvt.s32.f32 %v729
    %v738 = vcvt.s32.f32 %v730
    %v739 = vcvt.s32.f32 %v731
    %v740 = vcvt.s32.f32 %v732
    %v741 = vsel %vm124, %v733, 0.0
    %v742 = vsel %vm124, %v734, 0.0
    %v743 = vadd.f32 %v741, %v742
    %v744 = vsel %vm124, %v735, 0.0
    %v745 = vadd.f32 %v743, %v744
    %v746 = vsel %vm124, %v736, 0.0
    %v747 = vadd.f32 %v745, %v746
    %v748 = vsel %vm124, %v737, 0.0
    %v749 = vadd.f32 %v747, %v748
    %v750 = vsel %vm124, %v738, 0.0
    %v751 = vadd.f32 %v749, %v750
    %v752 = vsel %vm124, %v739, 0.0
    %v753 = vadd.f32 %v751, %v752
    %v754 = vsel %vm124, %v740, 0.0
    %v755 = vadd.f32 %v753, %v754
    %756 = vadd.xlane.f32.xlu0 %v755
    %v757 = vpop.xlane.xlu0 %756
    %vm758 = vcmp.ge.f32.partialorder %v757, 512.0
    %v759 = vsel %vm758, %v716, %v715
    %v760 = vor.u32 %v759, 32768
    %vm761 = vcmp.ge.s32.totalorder %v73, %v760
    %vm762 = vcmp.ge.s32.totalorder %v81, %v760
    %vm763 = vcmp.ge.s32.totalorder %v80, %v760
    %vm764 = vcmp.ge.s32.totalorder %v82, %v760
    %vm765 = vcmp.ge.s32.totalorder %v90, %v760
    %vm766 = vcmp.ge.s32.totalorder %v98, %v760
    %vm767 = vcmp.ge.s32.totalorder %v97, %v760
    %vm768 = vcmp.ge.s32.totalorder %v99, %v760
    %v769 = vsel %vm761, 1, 0
    %v770 = vsel %vm762, 1, 0
    %v771 = vsel %vm763, 1, 0
    %v772 = vsel %vm764, 1, 0
    %v773 = vsel %vm765, 1, 0
    %v774 = vsel %vm766, 1, 0
    %v775 = vsel %vm767, 1, 0
    %v776 = vsel %vm768, 1, 0
    %v777 = vcvt.s32.f32 %v769
    %v778 = vcvt.s32.f32 %v770
    %v779 = vcvt.s32.f32 %v771
    %v780 = vcvt.s32.f32 %v772
    %v781 = vcvt.s32.f32 %v773
    %v782 = vcvt.s32.f32 %v774
    %v783 = vcvt.s32.f32 %v775
    %v784 = vcvt.s32.f32 %v776
    %v785 = vsel %vm124, %v777, 0.0
    %v786 = vsel %vm124, %v778, 0.0
    %v787 = vadd.f32 %v785, %v786
    %v788 = vsel %vm124, %v779, 0.0
    %v789 = vadd.f32 %v787, %v788
    %v790 = vsel %vm124, %v780, 0.0
    %v791 = vadd.f32 %v789, %v790
    %v792 = vsel %vm124, %v781, 0.0
    %v793 = vadd.f32 %v791, %v792
    %v794 = vsel %vm124, %v782, 0.0
    %v795 = vadd.f32 %v793, %v794
    %v796 = vsel %vm124, %v783, 0.0
    %v797 = vadd.f32 %v795, %v796
    %v798 = vsel %vm124, %v784, 0.0
    %v799 = vadd.f32 %v797, %v798
    %800 = vadd.xlane.f32.xlu0 %v799
    %v801 = vpop.xlane.xlu0 %800
    %vm802 = vcmp.ge.f32.partialorder %v801, 512.0
    %v803 = vsel %vm802, %v760, %v759
    %v804 = vor.u32 %v803, 16384
    %vm805 = vcmp.ge.s32.totalorder %v73, %v804
    %vm806 = vcmp.ge.s32.totalorder %v81, %v804
    %vm807 = vcmp.ge.s32.totalorder %v80, %v804
    %vm808 = vcmp.ge.s32.totalorder %v82, %v804
    %vm809 = vcmp.ge.s32.totalorder %v90, %v804
    %vm810 = vcmp.ge.s32.totalorder %v98, %v804
    %vm811 = vcmp.ge.s32.totalorder %v97, %v804
    %vm812 = vcmp.ge.s32.totalorder %v99, %v804
    %v813 = vsel %vm805, 1, 0
    %v814 = vsel %vm806, 1, 0
    %v815 = vsel %vm807, 1, 0
    %v816 = vsel %vm808, 1, 0
    %v817 = vsel %vm809, 1, 0
    %v818 = vsel %vm810, 1, 0
    %v819 = vsel %vm811, 1, 0
    %v820 = vsel %vm812, 1, 0
    %v821 = vcvt.s32.f32 %v813
    %v822 = vcvt.s32.f32 %v814
    %v823 = vcvt.s32.f32 %v815
    %v824 = vcvt.s32.f32 %v816
    %v825 = vcvt.s32.f32 %v817
    %v826 = vcvt.s32.f32 %v818
    %v827 = vcvt.s32.f32 %v819
    %v828 = vcvt.s32.f32 %v820
    %v829 = vsel %vm124, %v821, 0.0
    %v830 = vsel %vm124, %v822, 0.0
    %v831 = vadd.f32 %v829, %v830
    %v832 = vsel %vm124, %v823, 0.0
    %v833 = vadd.f32 %v831, %v832
    %v834 = vsel %vm124, %v824, 0.0
    %v835 = vadd.f32 %v833, %v834
    %v836 = vsel %vm124, %v825, 0.0
    %v837 = vadd.f32 %v835, %v836
    %v838 = vsel %vm124, %v826, 0.0
    %v839 = vadd.f32 %v837, %v838
    %v840 = vsel %vm124, %v827, 0.0
    %v841 = vadd.f32 %v839, %v840
    %v842 = vsel %vm124, %v828, 0.0
    %v843 = vadd.f32 %v841, %v842
    %844 = vadd.xlane.f32.xlu0 %v843
    %v845 = vpop.xlane.xlu0 %844
    %vm846 = vcmp.ge.f32.partialorder %v845, 512.0
    %v847 = vsel %vm846, %v804, %v803
    %v848 = vor.u32 %v847, 8192
    %vm849 = vcmp.ge.s32.totalorder %v73, %v848
    %vm850 = vcmp.ge.s32.totalorder %v81, %v848
    %vm851 = vcmp.ge.s32.totalorder %v80, %v848
    %vm852 = vcmp.ge.s32.totalorder %v82, %v848
    %vm853 = vcmp.ge.s32.totalorder %v90, %v848
    %vm854 = vcmp.ge.s32.totalorder %v98, %v848
    %vm855 = vcmp.ge.s32.totalorder %v97, %v848
    %vm856 = vcmp.ge.s32.totalorder %v99, %v848
    %v857 = vsel %vm849, 1, 0
    %v858 = vsel %vm850, 1, 0
    %v859 = vsel %vm851, 1, 0
    %v860 = vsel %vm852, 1, 0
    %v861 = vsel %vm853, 1, 0
    %v862 = vsel %vm854, 1, 0
    %v863 = vsel %vm855, 1, 0
    %v864 = vsel %vm856, 1, 0
    %v865 = vcvt.s32.f32 %v857
    %v866 = vcvt.s32.f32 %v858
    %v867 = vcvt.s32.f32 %v859
    %v868 = vcvt.s32.f32 %v860
    %v869 = vcvt.s32.f32 %v861
    %v870 = vcvt.s32.f32 %v862
    %v871 = vcvt.s32.f32 %v863
    %v872 = vcvt.s32.f32 %v864
    %v873 = vsel %vm124, %v865, 0.0
    %v874 = vsel %vm124, %v866, 0.0
    %v875 = vadd.f32 %v873, %v874
    %v876 = vsel %vm124, %v867, 0.0
    %v877 = vadd.f32 %v875, %v876
    %v878 = vsel %vm124, %v868, 0.0
    %v879 = vadd.f32 %v877, %v878
    %v880 = vsel %vm124, %v869, 0.0
    %v881 = vadd.f32 %v879, %v880
    %v882 = vsel %vm124, %v870, 0.0
    %v883 = vadd.f32 %v881, %v882
    %v884 = vsel %vm124, %v871, 0.0
    %v885 = vadd.f32 %v883, %v884
    %v886 = vsel %vm124, %v872, 0.0
    %v887 = vadd.f32 %v885, %v886
    %888 = vadd.xlane.f32.xlu0 %v887
    %v889 = vpop.xlane.xlu0 %888
    %vm890 = vcmp.ge.f32.partialorder %v889, 512.0
    %v891 = vsel %vm890, %v848, %v847
    %v892 = vor.u32 %v891, 4096
    %vm893 = vcmp.ge.s32.totalorder %v73, %v892
    %vm894 = vcmp.ge.s32.totalorder %v81, %v892
    %vm895 = vcmp.ge.s32.totalorder %v80, %v892
    %vm896 = vcmp.ge.s32.totalorder %v82, %v892
    %vm897 = vcmp.ge.s32.totalorder %v90, %v892
    %vm898 = vcmp.ge.s32.totalorder %v98, %v892
    %vm899 = vcmp.ge.s32.totalorder %v97, %v892
    %vm900 = vcmp.ge.s32.totalorder %v99, %v892
    %v901 = vsel %vm893, 1, 0
    %v902 = vsel %vm894, 1, 0
    %v903 = vsel %vm895, 1, 0
    %v904 = vsel %vm896, 1, 0
    %v905 = vsel %vm897, 1, 0
    %v906 = vsel %vm898, 1, 0
    %v907 = vsel %vm899, 1, 0
    %v908 = vsel %vm900, 1, 0
    %v909 = vcvt.s32.f32 %v901
    %v910 = vcvt.s32.f32 %v902
    %v911 = vcvt.s32.f32 %v903
    %v912 = vcvt.s32.f32 %v904
    %v913 = vcvt.s32.f32 %v905
    %v914 = vcvt.s32.f32 %v906
    %v915 = vcvt.s32.f32 %v907
    %v916 = vcvt.s32.f32 %v908
    %v917 = vsel %vm124, %v909, 0.0
    %v918 = vsel %vm124, %v910, 0.0
    %v919 = vadd.f32 %v917, %v918
    %v920 = vsel %vm124, %v911, 0.0
    %v921 = vadd.f32 %v919, %v920
    %v922 = vsel %vm124, %v912, 0.0
    %v923 = vadd.f32 %v921, %v922
    %v924 = vsel %vm124, %v913, 0.0
    %v925 = vadd.f32 %v923, %v924
    %v926 = vsel %vm124, %v914, 0.0
    %v927 = vadd.f32 %v925, %v926
    %v928 = vsel %vm124, %v915, 0.0
    %v929 = vadd.f32 %v927, %v928
    %v930 = vsel %vm124, %v916, 0.0
    %v931 = vadd.f32 %v929, %v930
    %932 = vadd.xlane.f32.xlu0 %v931
    %v933 = vpop.xlane.xlu0 %932
    %vm934 = vcmp.ge.f32.partialorder %v933, 512.0
    %v935 = vsel %vm934, %v892, %v891
    %v936 = vor.u32 %v935, 2048
    %vm937 = vcmp.ge.s32.totalorder %v73, %v936
    %vm938 = vcmp.ge.s32.totalorder %v81, %v936
    %vm939 = vcmp.ge.s32.totalorder %v80, %v936
    %vm940 = vcmp.ge.s32.totalorder %v82, %v936
    %vm941 = vcmp.ge.s32.totalorder %v90, %v936
    %vm942 = vcmp.ge.s32.totalorder %v98, %v936
    %vm943 = vcmp.ge.s32.totalorder %v97, %v936
    %vm944 = vcmp.ge.s32.totalorder %v99, %v936
    %v945 = vsel %vm937, 1, 0
    %v946 = vsel %vm938, 1, 0
    %v947 = vsel %vm939, 1, 0
    %v948 = vsel %vm940, 1, 0
    %v949 = vsel %vm941, 1, 0
    %v950 = vsel %vm942, 1, 0
    %v951 = vsel %vm943, 1, 0
    %v952 = vsel %vm944, 1, 0
    %v953 = vcvt.s32.f32 %v945
    %v954 = vcvt.s32.f32 %v946
    %v955 = vcvt.s32.f32 %v947
    %v956 = vcvt.s32.f32 %v948
    %v957 = vcvt.s32.f32 %v949
    %v958 = vcvt.s32.f32 %v950
    %v959 = vcvt.s32.f32 %v951
    %v960 = vcvt.s32.f32 %v952
    %v961 = vsel %vm124, %v953, 0.0
    %v962 = vsel %vm124, %v954, 0.0
    %v963 = vadd.f32 %v961, %v962
    %v964 = vsel %vm124, %v955, 0.0
    %v965 = vadd.f32 %v963, %v964
    %v966 = vsel %vm124, %v956, 0.0
    %v967 = vadd.f32 %v965, %v966
    %v968 = vsel %vm124, %v957, 0.0
    %v969 = vadd.f32 %v967, %v968
    %v970 = vsel %vm124, %v958, 0.0
    %v971 = vadd.f32 %v969, %v970
    %v972 = vsel %vm124, %v959, 0.0
    %v973 = vadd.f32 %v971, %v972
    %v974 = vsel %vm124, %v960, 0.0
    %v975 = vadd.f32 %v973, %v974
    %976 = vadd.xlane.f32.xlu0 %v975
    %v977 = vpop.xlane.xlu0 %976
    %vm978 = vcmp.ge.f32.partialorder %v977, 512.0
    %v979 = vsel %vm978, %v936, %v935
    %v980 = vor.u32 %v979, 1024
    %vm981 = vcmp.ge.s32.totalorder %v73, %v980
    %vm982 = vcmp.ge.s32.totalorder %v81, %v980
    %vm983 = vcmp.ge.s32.totalorder %v80, %v980
    %vm984 = vcmp.ge.s32.totalorder %v82, %v980
    %vm985 = vcmp.ge.s32.totalorder %v90, %v980
    %vm986 = vcmp.ge.s32.totalorder %v98, %v980
    %vm987 = vcmp.ge.s32.totalorder %v97, %v980
    %vm988 = vcmp.ge.s32.totalorder %v99, %v980
    %v989 = vsel %vm981, 1, 0
    %v990 = vsel %vm982, 1, 0
    %v991 = vsel %vm983, 1, 0
    %v992 = vsel %vm984, 1, 0
    %v993 = vsel %vm985, 1, 0
    %v994 = vsel %vm986, 1, 0
    %v995 = vsel %vm987, 1, 0
    %v996 = vsel %vm988, 1, 0
    %v997 = vcvt.s32.f32 %v989
    %v998 = vcvt.s32.f32 %v990
    %v999 = vcvt.s32.f32 %v991
    %v1000 = vcvt.s32.f32 %v992
    %v1001 = vcvt.s32.f32 %v993
    %v1002 = vcvt.s32.f32 %v994
    %v1003 = vcvt.s32.f32 %v995
    %v1004 = vcvt.s32.f32 %v996
    %v1005 = vsel %vm124, %v997, 0.0
    %v1006 = vsel %vm124, %v998, 0.0
    %v1007 = vadd.f32 %v1005, %v1006
    %v1008 = vsel %vm124, %v999, 0.0
    %v1009 = vadd.f32 %v1007, %v1008
    %v1010 = vsel %vm124, %v1000, 0.0
    %v1011 = vadd.f32 %v1009, %v1010
    %v1012 = vsel %vm124, %v1001, 0.0
    %v1013 = vadd.f32 %v1011, %v1012
    %v1014 = vsel %vm124, %v1002, 0.0
    %v1015 = vadd.f32 %v1013, %v1014
    %v1016 = vsel %vm124, %v1003, 0.0
    %v1017 = vadd.f32 %v1015, %v1016
    %v1018 = vsel %vm124, %v1004, 0.0
    %v1019 = vadd.f32 %v1017, %v1018
    %1020 = vadd.xlane.f32.xlu0 %v1019
    %v1021 = vpop.xlane.xlu0 %1020
    %vm1022 = vcmp.ge.f32.partialorder %v1021, 512.0
    %v1023 = vsel %vm1022, %v980, %v979
    %v1024 = vor.u32 %v1023, 512
    %vm1025 = vcmp.ge.s32.totalorder %v73, %v1024
    %vm1026 = vcmp.ge.s32.totalorder %v81, %v1024
    %vm1027 = vcmp.ge.s32.totalorder %v80, %v1024
    %vm1028 = vcmp.ge.s32.totalorder %v82, %v1024
    %vm1029 = vcmp.ge.s32.totalorder %v90, %v1024
    %vm1030 = vcmp.ge.s32.totalorder %v98, %v1024
    %vm1031 = vcmp.ge.s32.totalorder %v97, %v1024
    %vm1032 = vcmp.ge.s32.totalorder %v99, %v1024
    %v1033 = vsel %vm1025, 1, 0
    %v1034 = vsel %vm1026, 1, 0
    %v1035 = vsel %vm1027, 1, 0
    %v1036 = vsel %vm1028, 1, 0
    %v1037 = vsel %vm1029, 1, 0
    %v1038 = vsel %vm1030, 1, 0
    %v1039 = vsel %vm1031, 1, 0
    %v1040 = vsel %vm1032, 1, 0
    %v1041 = vcvt.s32.f32 %v1033
    %v1042 = vcvt.s32.f32 %v1034
    %v1043 = vcvt.s32.f32 %v1035
    %v1044 = vcvt.s32.f32 %v1036
    %v1045 = vcvt.s32.f32 %v1037
    %v1046 = vcvt.s32.f32 %v1038
    %v1047 = vcvt.s32.f32 %v1039
    %v1048 = vcvt.s32.f32 %v1040
    %v1049 = vsel %vm124, %v1041, 0.0
    %v1050 = vsel %vm124, %v1042, 0.0
    %v1051 = vadd.f32 %v1049, %v1050
    %v1052 = vsel %vm124, %v1043, 0.0
    %v1053 = vadd.f32 %v1051, %v1052
    %v1054 = vsel %vm124, %v1044, 0.0
    %v1055 = vadd.f32 %v1053, %v1054
    %v1056 = vsel %vm124, %v1045, 0.0
    %v1057 = vadd.f32 %v1055, %v1056
    %v1058 = vsel %vm124, %v1046, 0.0
    %v1059 = vadd.f32 %v1057, %v1058
    %v1060 = vsel %vm124, %v1047, 0.0
    %v1061 = vadd.f32 %v1059, %v1060
    %v1062 = vsel %vm124, %v1048, 0.0
    %v1063 = vadd.f32 %v1061, %v1062
    %1064 = vadd.xlane.f32.xlu0 %v1063
    %v1065 = vpop.xlane.xlu0 %1064
    %vm1066 = vcmp.ge.f32.partialorder %v1065, 512.0
    %v1067 = vsel %vm1066, %v1024, %v1023
    %v1068 = vor.u32 %v1067, 256
    %vm1069 = vcmp.ge.s32.totalorder %v73, %v1068
    %vm1070 = vcmp.ge.s32.totalorder %v81, %v1068
    %vm1071 = vcmp.ge.s32.totalorder %v80, %v1068
    %vm1072 = vcmp.ge.s32.totalorder %v82, %v1068
    %vm1073 = vcmp.ge.s32.totalorder %v90, %v1068
    %vm1074 = vcmp.ge.s32.totalorder %v98, %v1068
    %vm1075 = vcmp.ge.s32.totalorder %v97, %v1068
    %vm1076 = vcmp.ge.s32.totalorder %v99, %v1068
    %v1077 = vsel %vm1069, 1, 0
    %v1078 = vsel %vm1070, 1, 0
    %v1079 = vsel %vm1071, 1, 0
    %v1080 = vsel %vm1072, 1, 0
    %v1081 = vsel %vm1073, 1, 0
    %v1082 = vsel %vm1074, 1, 0
    %v1083 = vsel %vm1075, 1, 0
    %v1084 = vsel %vm1076, 1, 0
    %v1085 = vcvt.s32.f32 %v1077
    %v1086 = vcvt.s32.f32 %v1078
    %v1087 = vcvt.s32.f32 %v1079
    %v1088 = vcvt.s32.f32 %v1080
    %v1089 = vcvt.s32.f32 %v1081
    %v1090 = vcvt.s32.f32 %v1082
    %v1091 = vcvt.s32.f32 %v1083
    %v1092 = vcvt.s32.f32 %v1084
    %v1093 = vsel %vm124, %v1085, 0.0
    %v1094 = vsel %vm124, %v1086, 0.0
    %v1095 = vadd.f32 %v1093, %v1094
    %v1096 = vsel %vm124, %v1087, 0.0
    %v1097 = vadd.f32 %v1095, %v1096
    %v1098 = vsel %vm124, %v1088, 0.0
    %v1099 = vadd.f32 %v1097, %v1098
    %v1100 = vsel %vm124, %v1089, 0.0
    %v1101 = vadd.f32 %v1099, %v1100
    %v1102 = vsel %vm124, %v1090, 0.0
    %v1103 = vadd.f32 %v1101, %v1102
    %v1104 = vsel %vm124, %v1091, 0.0
    %v1105 = vadd.f32 %v1103, %v1104
    %v1106 = vsel %vm124, %v1092, 0.0
    %v1107 = vadd.f32 %v1105, %v1106
    %1108 = vadd.xlane.f32.xlu0 %v1107
    %v1109 = vpop.xlane.xlu0 %1108
    %vm1110 = vcmp.ge.f32.partialorder %v1109, 512.0
    %v1111 = vsel %vm1110, %v1068, %v1067
    %v1112 = vor.u32 %v1111, 128
    %vm1113 = vcmp.ge.s32.totalorder %v73, %v1112
    %vm1114 = vcmp.ge.s32.totalorder %v81, %v1112
    %vm1115 = vcmp.ge.s32.totalorder %v80, %v1112
    %vm1116 = vcmp.ge.s32.totalorder %v82, %v1112
    %vm1117 = vcmp.ge.s32.totalorder %v90, %v1112
    %vm1118 = vcmp.ge.s32.totalorder %v98, %v1112
    %vm1119 = vcmp.ge.s32.totalorder %v97, %v1112
    %vm1120 = vcmp.ge.s32.totalorder %v99, %v1112
    %v1121 = vsel %vm1113, 1, 0
    %v1122 = vsel %vm1114, 1, 0
    %v1123 = vsel %vm1115, 1, 0
    %v1124 = vsel %vm1116, 1, 0
    %v1125 = vsel %vm1117, 1, 0
    %v1126 = vsel %vm1118, 1, 0
    %v1127 = vsel %vm1119, 1, 0
    %v1128 = vsel %vm1120, 1, 0
    %v1129 = vcvt.s32.f32 %v1121
    %v1130 = vcvt.s32.f32 %v1122
    %v1131 = vcvt.s32.f32 %v1123
    %v1132 = vcvt.s32.f32 %v1124
    %v1133 = vcvt.s32.f32 %v1125
    %v1134 = vcvt.s32.f32 %v1126
    %v1135 = vcvt.s32.f32 %v1127
    %v1136 = vcvt.s32.f32 %v1128
    %v1137 = vsel %vm124, %v1129, 0.0
    %v1138 = vsel %vm124, %v1130, 0.0
    %v1139 = vadd.f32 %v1137, %v1138
    %v1140 = vsel %vm124, %v1131, 0.0
    %v1141 = vadd.f32 %v1139, %v1140
    %v1142 = vsel %vm124, %v1132, 0.0
    %v1143 = vadd.f32 %v1141, %v1142
    %v1144 = vsel %vm124, %v1133, 0.0
    %v1145 = vadd.f32 %v1143, %v1144
    %v1146 = vsel %vm124, %v1134, 0.0
    %v1147 = vadd.f32 %v1145, %v1146
    %v1148 = vsel %vm124, %v1135, 0.0
    %v1149 = vadd.f32 %v1147, %v1148
    %v1150 = vsel %vm124, %v1136, 0.0
    %v1151 = vadd.f32 %v1149, %v1150
    %1152 = vadd.xlane.f32.xlu0 %v1151
    %v1153 = vpop.xlane.xlu0 %1152
    %vm1154 = vcmp.ge.f32.partialorder %v1153, 512.0
    %v1155 = vsel %vm1154, %v1112, %v1111
    %v1156 = vor.u32 %v1155, 64
    %vm1157 = vcmp.ge.s32.totalorder %v73, %v1156
    %vm1158 = vcmp.ge.s32.totalorder %v81, %v1156
    %vm1159 = vcmp.ge.s32.totalorder %v80, %v1156
    %vm1160 = vcmp.ge.s32.totalorder %v82, %v1156
    %vm1161 = vcmp.ge.s32.totalorder %v90, %v1156
    %vm1162 = vcmp.ge.s32.totalorder %v98, %v1156
    %vm1163 = vcmp.ge.s32.totalorder %v97, %v1156
    %vm1164 = vcmp.ge.s32.totalorder %v99, %v1156
    %v1165 = vsel %vm1157, 1, 0
    %v1166 = vsel %vm1158, 1, 0
    %v1167 = vsel %vm1159, 1, 0
    %v1168 = vsel %vm1160, 1, 0
    %v1169 = vsel %vm1161, 1, 0
    %v1170 = vsel %vm1162, 1, 0
    %v1171 = vsel %vm1163, 1, 0
    %v1172 = vsel %vm1164, 1, 0
    %v1173 = vcvt.s32.f32 %v1165
    %v1174 = vcvt.s32.f32 %v1166
    %v1175 = vcvt.s32.f32 %v1167
    %v1176 = vcvt.s32.f32 %v1168
    %v1177 = vcvt.s32.f32 %v1169
    %v1178 = vcvt.s32.f32 %v1170
    %v1179 = vcvt.s32.f32 %v1171
    %v1180 = vcvt.s32.f32 %v1172
    %v1181 = vsel %vm124, %v1173, 0.0
    %v1182 = vsel %vm124, %v1174, 0.0
    %v1183 = vadd.f32 %v1181, %v1182
    %v1184 = vsel %vm124, %v1175, 0.0
    %v1185 = vadd.f32 %v1183, %v1184
    %v1186 = vsel %vm124, %v1176, 0.0
    %v1187 = vadd.f32 %v1185, %v1186
    %v1188 = vsel %vm124, %v1177, 0.0
    %v1189 = vadd.f32 %v1187, %v1188
    %v1190 = vsel %vm124, %v1178, 0.0
    %v1191 = vadd.f32 %v1189, %v1190
    %v1192 = vsel %vm124, %v1179, 0.0
    %v1193 = vadd.f32 %v1191, %v1192
    %v1194 = vsel %vm124, %v1180, 0.0
    %v1195 = vadd.f32 %v1193, %v1194
    %1196 = vadd.xlane.f32.xlu0 %v1195
    %v1197 = vpop.xlane.xlu0 %1196
    %vm1198 = vcmp.ge.f32.partialorder %v1197, 512.0
    %v1199 = vsel %vm1198, %v1156, %v1155
    %v1200 = vor.u32 %v1199, 32
    %vm1201 = vcmp.ge.s32.totalorder %v73, %v1200
    %vm1202 = vcmp.ge.s32.totalorder %v81, %v1200
    %vm1203 = vcmp.ge.s32.totalorder %v80, %v1200
    %vm1204 = vcmp.ge.s32.totalorder %v82, %v1200
    %vm1205 = vcmp.ge.s32.totalorder %v90, %v1200
    %vm1206 = vcmp.ge.s32.totalorder %v98, %v1200
    %vm1207 = vcmp.ge.s32.totalorder %v97, %v1200
    %vm1208 = vcmp.ge.s32.totalorder %v99, %v1200
    %v1209 = vsel %vm1201, 1, 0
    %v1210 = vsel %vm1202, 1, 0
    %v1211 = vsel %vm1203, 1, 0
    %v1212 = vsel %vm1204, 1, 0
    %v1213 = vsel %vm1205, 1, 0
    %v1214 = vsel %vm1206, 1, 0
    %v1215 = vsel %vm1207, 1, 0
    %v1216 = vsel %vm1208, 1, 0
    %v1217 = vcvt.s32.f32 %v1209
    %v1218 = vcvt.s32.f32 %v1210
    %v1219 = vcvt.s32.f32 %v1211
    %v1220 = vcvt.s32.f32 %v1212
    %v1221 = vcvt.s32.f32 %v1213
    %v1222 = vcvt.s32.f32 %v1214
    %v1223 = vcvt.s32.f32 %v1215
    %v1224 = vcvt.s32.f32 %v1216
    %v1225 = vsel %vm124, %v1217, 0.0
    %v1226 = vsel %vm124, %v1218, 0.0
    %v1227 = vadd.f32 %v1225, %v1226
    %v1228 = vsel %vm124, %v1219, 0.0
    %v1229 = vadd.f32 %v1227, %v1228
    %v1230 = vsel %vm124, %v1220, 0.0
    %v1231 = vadd.f32 %v1229, %v1230
    %v1232 = vsel %vm124, %v1221, 0.0
    %v1233 = vadd.f32 %v1231, %v1232
    %v1234 = vsel %vm124, %v1222, 0.0
    %v1235 = vadd.f32 %v1233, %v1234
    %v1236 = vsel %vm124, %v1223, 0.0
    %v1237 = vadd.f32 %v1235, %v1236
    %v1238 = vsel %vm124, %v1224, 0.0
    %v1239 = vadd.f32 %v1237, %v1238
    %1240 = vadd.xlane.f32.xlu0 %v1239
    %v1241 = vpop.xlane.xlu0 %1240
    %vm1242 = vcmp.ge.f32.partialorder %v1241, 512.0
    %v1243 = vsel %vm1242, %v1200, %v1199
    %v1244 = vor.u32 %v1243, 16
    %vm1245 = vcmp.ge.s32.totalorder %v73, %v1244
    %vm1246 = vcmp.ge.s32.totalorder %v81, %v1244
    %vm1247 = vcmp.ge.s32.totalorder %v80, %v1244
    %vm1248 = vcmp.ge.s32.totalorder %v82, %v1244
    %vm1249 = vcmp.ge.s32.totalorder %v90, %v1244
    %vm1250 = vcmp.ge.s32.totalorder %v98, %v1244
    %vm1251 = vcmp.ge.s32.totalorder %v97, %v1244
    %vm1252 = vcmp.ge.s32.totalorder %v99, %v1244
    %v1253 = vsel %vm1245, 1, 0
    %v1254 = vsel %vm1246, 1, 0
    %v1255 = vsel %vm1247, 1, 0
    %v1256 = vsel %vm1248, 1, 0
    %v1257 = vsel %vm1249, 1, 0
    %v1258 = vsel %vm1250, 1, 0
    %v1259 = vsel %vm1251, 1, 0
    %v1260 = vsel %vm1252, 1, 0
    %v1261 = vcvt.s32.f32 %v1253
    %v1262 = vcvt.s32.f32 %v1254
    %v1263 = vcvt.s32.f32 %v1255
    %v1264 = vcvt.s32.f32 %v1256
    %v1265 = vcvt.s32.f32 %v1257
    %v1266 = vcvt.s32.f32 %v1258
    %v1267 = vcvt.s32.f32 %v1259
    %v1268 = vcvt.s32.f32 %v1260
    %v1269 = vsel %vm124, %v1261, 0.0
    %v1270 = vsel %vm124, %v1262, 0.0
    %v1271 = vadd.f32 %v1269, %v1270
    %v1272 = vsel %vm124, %v1263, 0.0
    %v1273 = vadd.f32 %v1271, %v1272
    %v1274 = vsel %vm124, %v1264, 0.0
    %v1275 = vadd.f32 %v1273, %v1274
    %v1276 = vsel %vm124, %v1265, 0.0
    %v1277 = vadd.f32 %v1275, %v1276
    %v1278 = vsel %vm124, %v1266, 0.0
    %v1279 = vadd.f32 %v1277, %v1278
    %v1280 = vsel %vm124, %v1267, 0.0
    %v1281 = vadd.f32 %v1279, %v1280
    %v1282 = vsel %vm124, %v1268, 0.0
    %v1283 = vadd.f32 %v1281, %v1282
    %1284 = vadd.xlane.f32.xlu0 %v1283
    %v1285 = vpop.xlane.xlu0 %1284
    %vm1286 = vcmp.ge.f32.partialorder %v1285, 512.0
    %v1287 = vsel %vm1286, %v1244, %v1243
    %v1288 = vor.u32 %v1287, 8
    %vm1289 = vcmp.ge.s32.totalorder %v73, %v1288
    %vm1290 = vcmp.ge.s32.totalorder %v81, %v1288
    %vm1291 = vcmp.ge.s32.totalorder %v80, %v1288
    %vm1292 = vcmp.ge.s32.totalorder %v82, %v1288
    %vm1293 = vcmp.ge.s32.totalorder %v90, %v1288
    %vm1294 = vcmp.ge.s32.totalorder %v98, %v1288
    %vm1295 = vcmp.ge.s32.totalorder %v97, %v1288
    %vm1296 = vcmp.ge.s32.totalorder %v99, %v1288
    %v1297 = vsel %vm1289, 1, 0
    %v1298 = vsel %vm1290, 1, 0
    %v1299 = vsel %vm1291, 1, 0
    %v1300 = vsel %vm1292, 1, 0
    %v1301 = vsel %vm1293, 1, 0
    %v1302 = vsel %vm1294, 1, 0
    %v1303 = vsel %vm1295, 1, 0
    %v1304 = vsel %vm1296, 1, 0
    %v1305 = vcvt.s32.f32 %v1297
    %v1306 = vcvt.s32.f32 %v1298
    %v1307 = vcvt.s32.f32 %v1299
    %v1308 = vcvt.s32.f32 %v1300
    %v1309 = vcvt.s32.f32 %v1301
    %v1310 = vcvt.s32.f32 %v1302
    %v1311 = vcvt.s32.f32 %v1303
    %v1312 = vcvt.s32.f32 %v1304
    %v1313 = vsel %vm124, %v1305, 0.0
    %v1314 = vsel %vm124, %v1306, 0.0
    %v1315 = vadd.f32 %v1313, %v1314
    %v1316 = vsel %vm124, %v1307, 0.0
    %v1317 = vadd.f32 %v1315, %v1316
    %v1318 = vsel %vm124, %v1308, 0.0
    %v1319 = vadd.f32 %v1317, %v1318
    %v1320 = vsel %vm124, %v1309, 0.0
    %v1321 = vadd.f32 %v1319, %v1320
    %v1322 = vsel %vm124, %v1310, 0.0
    %v1323 = vadd.f32 %v1321, %v1322
    %v1324 = vsel %vm124, %v1311, 0.0
    %v1325 = vadd.f32 %v1323, %v1324
    %v1326 = vsel %vm124, %v1312, 0.0
    %v1327 = vadd.f32 %v1325, %v1326
    %1328 = vadd.xlane.f32.xlu0 %v1327
    %v1329 = vpop.xlane.xlu0 %1328
    %vm1330 = vcmp.ge.f32.partialorder %v1329, 512.0
    %v1331 = vsel %vm1330, %v1288, %v1287
    %v1332 = vor.u32 %v1331, 4
    %vm1333 = vcmp.ge.s32.totalorder %v73, %v1332
    %vm1334 = vcmp.ge.s32.totalorder %v81, %v1332
    %vm1335 = vcmp.ge.s32.totalorder %v80, %v1332
    %vm1336 = vcmp.ge.s32.totalorder %v82, %v1332
    %vm1337 = vcmp.ge.s32.totalorder %v90, %v1332
    %vm1338 = vcmp.ge.s32.totalorder %v98, %v1332
    %vm1339 = vcmp.ge.s32.totalorder %v97, %v1332
    %vm1340 = vcmp.ge.s32.totalorder %v99, %v1332
    %v1341 = vsel %vm1333, 1, 0
    %v1342 = vsel %vm1334, 1, 0
    %v1343 = vsel %vm1335, 1, 0
    %v1344 = vsel %vm1336, 1, 0
    %v1345 = vsel %vm1337, 1, 0
    %v1346 = vsel %vm1338, 1, 0
    %v1347 = vsel %vm1339, 1, 0
    %v1348 = vsel %vm1340, 1, 0
    %v1349 = vcvt.s32.f32 %v1341
    %v1350 = vcvt.s32.f32 %v1342
    %v1351 = vcvt.s32.f32 %v1343
    %v1352 = vcvt.s32.f32 %v1344
    %v1353 = vcvt.s32.f32 %v1345
    %v1354 = vcvt.s32.f32 %v1346
    %v1355 = vcvt.s32.f32 %v1347
    %v1356 = vcvt.s32.f32 %v1348
    %v1357 = vsel %vm124, %v1349, 0.0
    %v1358 = vsel %vm124, %v1350, 0.0
    %v1359 = vadd.f32 %v1357, %v1358
    %v1360 = vsel %vm124, %v1351, 0.0
    %v1361 = vadd.f32 %v1359, %v1360
    %v1362 = vsel %vm124, %v1352, 0.0
    %v1363 = vadd.f32 %v1361, %v1362
    %v1364 = vsel %vm124, %v1353, 0.0
    %v1365 = vadd.f32 %v1363, %v1364
    %v1366 = vsel %vm124, %v1354, 0.0
    %v1367 = vadd.f32 %v1365, %v1366
    %v1368 = vsel %vm124, %v1355, 0.0
    %v1369 = vadd.f32 %v1367, %v1368
    %v1370 = vsel %vm124, %v1356, 0.0
    %v1371 = vadd.f32 %v1369, %v1370
    %1372 = vadd.xlane.f32.xlu0 %v1371
    %v1373 = vpop.xlane.xlu0 %1372
    %vm1374 = vcmp.ge.f32.partialorder %v1373, 512.0
    %v1375 = vsel %vm1374, %v1332, %v1331
    %v1376 = vor.u32 %v1375, 2
    %vm1377 = vcmp.ge.s32.totalorder %v73, %v1376
    %vm1378 = vcmp.ge.s32.totalorder %v81, %v1376
    %vm1379 = vcmp.ge.s32.totalorder %v80, %v1376
    %vm1380 = vcmp.ge.s32.totalorder %v82, %v1376
    %vm1381 = vcmp.ge.s32.totalorder %v90, %v1376
    %vm1382 = vcmp.ge.s32.totalorder %v98, %v1376
    %vm1383 = vcmp.ge.s32.totalorder %v97, %v1376
    %vm1384 = vcmp.ge.s32.totalorder %v99, %v1376
    %v1385 = vsel %vm1377, 1, 0
    %v1386 = vsel %vm1378, 1, 0
    %v1387 = vsel %vm1379, 1, 0
    %v1388 = vsel %vm1380, 1, 0
    %v1389 = vsel %vm1381, 1, 0
    %v1390 = vsel %vm1382, 1, 0
    %v1391 = vsel %vm1383, 1, 0
    %v1392 = vsel %vm1384, 1, 0
    %v1393 = vcvt.s32.f32 %v1385
    %v1394 = vcvt.s32.f32 %v1386
    %v1395 = vcvt.s32.f32 %v1387
    %v1396 = vcvt.s32.f32 %v1388
    %v1397 = vcvt.s32.f32 %v1389
    %v1398 = vcvt.s32.f32 %v1390
    %v1399 = vcvt.s32.f32 %v1391
    %v1400 = vcvt.s32.f32 %v1392
    %v1401 = vsel %vm124, %v1393, 0.0
    %v1402 = vsel %vm124, %v1394, 0.0
    %v1403 = vadd.f32 %v1401, %v1402
    %v1404 = vsel %vm124, %v1395, 0.0
    %v1405 = vadd.f32 %v1403, %v1404
    %v1406 = vsel %vm124, %v1396, 0.0
    %v1407 = vadd.f32 %v1405, %v1406
    %v1408 = vsel %vm124, %v1397, 0.0
    %v1409 = vadd.f32 %v1407, %v1408
    %v1410 = vsel %vm124, %v1398, 0.0
    %v1411 = vadd.f32 %v1409, %v1410
    %v1412 = vsel %vm124, %v1399, 0.0
    %v1413 = vadd.f32 %v1411, %v1412
    %v1414 = vsel %vm124, %v1400, 0.0
    %v1415 = vadd.f32 %v1413, %v1414
    %1416 = vadd.xlane.f32.xlu0 %v1415
    %v1417 = vpop.xlane.xlu0 %1416
    %vm1418 = vcmp.ge.f32.partialorder %v1417, 512.0
    %v1419 = vsel %vm1418, %v1376, %v1375
    %v1420 = vor.u32 %v1419, 1
    %vm1421 = vcmp.ge.s32.totalorder %v73, %v1420
    %vm1422 = vcmp.ge.s32.totalorder %v81, %v1420
    %vm1423 = vcmp.ge.s32.totalorder %v80, %v1420
    %vm1424 = vcmp.ge.s32.totalorder %v82, %v1420
    %vm1425 = vcmp.ge.s32.totalorder %v90, %v1420
    %vm1426 = vcmp.ge.s32.totalorder %v98, %v1420
    %vm1427 = vcmp.ge.s32.totalorder %v97, %v1420
    %vm1428 = vcmp.ge.s32.totalorder %v99, %v1420
    %v1429 = vsel %vm1421, 1, 0
    %v1430 = vsel %vm1422, 1, 0
    %v1431 = vsel %vm1423, 1, 0
    %v1432 = vsel %vm1424, 1, 0
    %v1433 = vsel %vm1425, 1, 0
    %v1434 = vsel %vm1426, 1, 0
    %v1435 = vsel %vm1427, 1, 0
    %v1436 = vsel %vm1428, 1, 0
    %v1437 = vcvt.s32.f32 %v1429
    %v1438 = vcvt.s32.f32 %v1430
    %v1439 = vcvt.s32.f32 %v1431
    %v1440 = vcvt.s32.f32 %v1432
    %v1441 = vcvt.s32.f32 %v1433
    %v1442 = vcvt.s32.f32 %v1434
    %v1443 = vcvt.s32.f32 %v1435
    %v1444 = vcvt.s32.f32 %v1436
    %v1445 = vsel %vm124, %v1437, 0.0
    %v1446 = vsel %vm124, %v1438, 0.0
    %v1447 = vadd.f32 %v1445, %v1446
    %v1448 = vsel %vm124, %v1439, 0.0
    %v1449 = vadd.f32 %v1447, %v1448
    %v1450 = vsel %vm124, %v1440, 0.0
    %v1451 = vadd.f32 %v1449, %v1450
    %v1452 = vsel %vm124, %v1441, 0.0
    %v1453 = vadd.f32 %v1451, %v1452
    %v1454 = vsel %vm124, %v1442, 0.0
    %v1455 = vadd.f32 %v1453, %v1454
    %v1456 = vsel %vm124, %v1443, 0.0
    %v1457 = vadd.f32 %v1455, %v1456
    %v1458 = vsel %vm124, %v1444, 0.0
    %v1459 = vadd.f32 %v1457, %v1458
    %1460 = vadd.xlane.f32.xlu0 %v1459
    %v1461 = vpop.xlane.xlu0 %1460
    %vm1462 = vcmp.ge.f32.partialorder %v1461, 512.0
    %v1463 = vsel %vm1462, %v1420, %v1419
    %vm1465 = vcmp.gt.s32.totalorder %v73, %v1463
    %vm1466 = vcmp.gt.s32.totalorder %v81, %v1463
    %vm1467 = vcmp.gt.s32.totalorder %v80, %v1463
    %vm1468 = vcmp.gt.s32.totalorder %v82, %v1463
    %vm1469 = vcmp.gt.s32.totalorder %v90, %v1463
    %vm1470 = vcmp.gt.s32.totalorder %v98, %v1463
    %vm1471 = vcmp.gt.s32.totalorder %v97, %v1463
    %vm1472 = vcmp.gt.s32.totalorder %v99, %v1463
    %v1481 = vsel %vm1465, %v73, 0.0
    %v1482 = vsel %vm1466, %v81, 0.0
    %v1483 = vsel %vm1467, %v80, 0.0
    %v1484 = vsel %vm1468, %v82, 0.0
    %v1485 = vsel %vm1469, %v90, 0.0
    %v1486 = vsel %vm1470, %v98, 0.0
    %v1487 = vsel %vm1471, %v97, 0.0
    %v1488 = vsel %vm1472, %v99, 0.0
    %v1489 = vsel %vm124, %v1481, 0.0
    %v1490 = vsel %vm124, %v1482, 0.0
    %v1491 = vadd.f32 %v1489, %v1490
    %v1492 = vsel %vm124, %v1483, 0.0
    %v1493 = vadd.f32 %v1491, %v1492
    %v1494 = vsel %vm124, %v1484, 0.0
    %v1495 = vadd.f32 %v1493, %v1494
    %v1496 = vsel %vm124, %v1485, 0.0
    %v1497 = vadd.f32 %v1495, %v1496
    %v1498 = vsel %vm124, %v1486, 0.0
    %v1499 = vadd.f32 %v1497, %v1498
    %v1500 = vsel %vm124, %v1487, 0.0
    %v1501 = vadd.f32 %v1499, %v1500
    %v1502 = vsel %vm124, %v1488, 0.0
    %v1503 = vadd.f32 %v1501, %v1502
    %1504 = vadd.xlane.f32.xlu0 %v1503
    %v1505 = vpop.xlane.xlu0 %1504
    %v1506 = vsel %vm1465, 1, 0
    %v1507 = vsel %vm1466, 1, 0
    %v1508 = vsel %vm1467, 1, 0
    %v1509 = vsel %vm1468, 1, 0
    %v1510 = vsel %vm1469, 1, 0
    %v1511 = vsel %vm1470, 1, 0
    %v1512 = vsel %vm1471, 1, 0
    %v1513 = vsel %vm1472, 1, 0
    %v1514 = vcvt.s32.f32 %v1506
    %v1515 = vcvt.s32.f32 %v1507
    %v1516 = vcvt.s32.f32 %v1508
    %v1517 = vcvt.s32.f32 %v1509
    %v1518 = vcvt.s32.f32 %v1510
    %v1519 = vcvt.s32.f32 %v1511
    %v1520 = vcvt.s32.f32 %v1512
    %v1521 = vcvt.s32.f32 %v1513
    %v1522 = vsel %vm124, %v1514, 0.0
    %v1523 = vsel %vm124, %v1515, 0.0
    %v1524 = vadd.f32 %v1522, %v1523
    %v1525 = vsel %vm124, %v1516, 0.0
    %v1526 = vadd.f32 %v1524, %v1525
    %v1527 = vsel %vm124, %v1517, 0.0
    %v1528 = vadd.f32 %v1526, %v1527
    %v1529 = vsel %vm124, %v1518, 0.0
    %v1530 = vadd.f32 %v1528, %v1529
    %v1531 = vsel %vm124, %v1519, 0.0
    %v1532 = vadd.f32 %v1530, %v1531
    %v1533 = vsel %vm124, %v1520, 0.0
    %v1534 = vadd.f32 %v1532, %v1533
    %v1535 = vsel %vm124, %v1521, 0.0
    %v1536 = vadd.f32 %v1534, %v1535
    %1537 = vadd.xlane.f32.xlu0 %v1536
    %v1538 = vpop.xlane.xlu0 %1537
    %v1539 = vsub.f32 512.0, %v1538
    %v1540 = vmul.f32 %v1539, %v1463
    %v1541 = vadd.f32 %v1505, %v1540
    %1542 = vst [vmem:[#allocation7] sm:$0x3] %v1541
    // Predicated region
    $region18: #{tpu_custom_call.1} parent=1 // pred_check
      _
    $region19: #{tpu_custom_call.1} parent=1 // pred_check_branch
      %1544 = sbr.rel (0) target = $region21
    $region20: #{tpu_custom_call.1} parent=1 // pred_region
      %s1546 = ssub.s32 32, 32
      %1547 = vsyncadd [#allocation4], %s1546
      %s1549 = sshll.u32 [#allocation7], 4
      %s1550 = int_to_ptr.vmem [resolvable:$true] %s1549
      %1552 = dma.vmem_to_hbm [thread:$0]  %s1550, 32, %s2, [#allocation4]
    $region21: #{tpu_custom_call.1} parent=1 // pred_fallthru
      _
    // Predicated region
    $region22: #{tpu_custom_call.1} parent=1 // pred_check
      _
    $region23: #{tpu_custom_call.1} parent=1 // pred_check_branch
      %1554 = sbr.rel (0) target = $region25
    $region24: #{tpu_custom_call.1} parent=1 // pred_region
      %1555 = dma.done [#allocation4], 32
    $region25: #{tpu_custom_call.1} parent=1 // pred_fallthru
      _
    %1556 = vsyncpa [#allocation3], 1
    %1557 = vsyncpa [#allocation6], 1
    %1558 = vsyncpa [#allocation4], 1

</llo_original>
